<compile_context>
chip_gen: v5e
topology: v5e:2x2
jax: 0.10.0
libtpu: 0.0.40
codegen_flags: <defaults>
</compile_context>

<pallas_src>
import functools
import math

import jax
import jax.numpy as jnp
import numpy as np
from jax import lax
from jax.experimental import pallas as pl
from jax.experimental.pallas import tpu as pltpu


# ----------------------------------------------------------------------------
# Pallas kernel
# ----------------------------------------------------------------------------
def _hcl_kernel(
    # scalar-prefetch refs (SMEM)
    pos_partner_ref, pos_valid_ref, neg_partner_ref, neg_valid_ref,
    pair_i_ref, pair_j_ref,
    # VMEM inputs
    emb_ref, pk_i_ref, pk_j_ref, lm_i_ref, lm_j_ref, oh_j_ref,
    # outputs
    hp_ref, hn_ref, sim_ref, loss_ref,
    # VMEM scratch
    hp_i_scr, hp_j_scr, sims_i_scr, sims_j_scr, rows_i_scr, rows_j_scr,
    *, tau, alpha, use_quantile, batch, num_pairs):
  f32 = jnp.float32

  # ---- 1. index-based hard-embedding mixing (VPU, O(B*D)) ------------------
  def mix_body(b, carry):
    e_b = emb_ref[pl.ds(b, 1), :]
    pi = pos_partner_ref[b]
    ni = neg_partner_ref[b]
    e_pp = emb_ref[pl.ds(pi, 1), :]
    e_pn = emb_ref[pl.ds(ni, 1), :]
    pv = pos_valid_ref[b].astype(f32)
    nv = neg_valid_ref[b].astype(f32)
    hp_ref[pl.ds(b, 1), :] = pv * (1.5 * e_b - 0.5 * e_pp)
    hn_ref[pl.ds(b, 1), :] = nv * (0.5 * e_b + 0.5 * e_pn)
    return carry

  lax.fori_loop(0, batch, mix_body, 0)

  # ---- 2. normalize rows, single hard-negative cosine gram (MXU) -----------
  def row_normalize(x):
    ss = jnp.sum(x * x, axis=1, keepdims=True)
    return x / jnp.sqrt(jnp.maximum(ss, 1e-16))

  emb = emb_ref[...]
  hn_n = row_normalize(hn_ref[...])
  hp_n = row_normalize(hp_ref[...])

  sumsq_e = jnp.sum(emb * emb, axis=1, keepdims=True)
  diag_orig = sumsq_e / jnp.maximum(sumsq_e, 1e-16)        # 1.0 for nonzero rows

  hn_gram = lax.dot_general(hn_n, hn_n, (((1,), (1,)), ((), ())),
                            preferred_element_type=f32)    # (B, B) cosine
  row_i = lax.broadcasted_iota(jnp.int32, (batch, batch), 0)
  col_i = lax.broadcasted_iota(jnp.int32, (batch, batch), 1)
  # base: original cosine on the diagonal, hard-negative cosine elsewhere
  sim_ref[...] = jnp.where(row_i == col_i, diag_orig, hn_gram)

  # ---- 3. gather per-pair rows (hp rows + base sim rows) --------------------
  def gather_body(p, carry):
    i = pair_i_ref[p]
    j = pair_j_ref[p]
    ri = hp_ref[pl.ds(i, 1), :]
    rj = hp_ref[pl.ds(j, 1), :]
    ri = ri / jnp.sqrt(jnp.maximum(jnp.sum(ri * ri, axis=1, keepdims=True),
                                   1e-16))
    rj = rj / jnp.sqrt(jnp.maximum(jnp.sum(rj * rj, axis=1, keepdims=True),
                                   1e-16))
    hp_i_scr[pl.ds(p, 1), :] = ri
    hp_j_scr[pl.ds(p, 1), :] = rj
    rows_i_scr[pl.ds(p, 1), :] = sim_ref[pl.ds(i, 1), :]
    rows_j_scr[pl.ds(p, 1), :] = sim_ref[pl.ds(j, 1), :]
    return carry

  lax.fori_loop(0, num_pairs, gather_body, 0)

  # ---- 4. hard-positive cosines only for touched rows, patch sim output -----
  sims_i_scr[...] = lax.dot_general(hp_i_scr[...], hp_n,
                                    (((1,), (1,)), ((), ())),
                                    preferred_element_type=f32)   # (P, B)
  sims_j_scr[...] = lax.dot_general(hp_j_scr[...], hp_n,
                                    (((1,), (1,)), ((), ())),
                                    preferred_element_type=f32)

  def patch_body(p, carry):
    i = pair_i_ref[p]
    j = pair_j_ref[p]
    cur_i = sim_ref[pl.ds(i, 1), :]
    cur_j = sim_ref[pl.ds(j, 1), :]
    new_i = jnp.where(pk_i_ref[pl.ds(p, 1), :] > 0.0,
                      sims_i_scr[pl.ds(p, 1), :], cur_i)
    new_j = jnp.where(pk_j_ref[pl.ds(p, 1), :] > 0.0,
                      sims_j_scr[pl.ds(p, 1), :], cur_j)
    sim_ref[pl.ds(i, 1), :] = new_i
    sim_ref[pl.ds(j, 1), :] = new_j
    return carry

  lax.fori_loop(0, num_pairs, patch_body, 0)

  # ---- 5. loss: exp only the 2P consumed rows, quantile, log-loss -----------
  rows_i = rows_i_scr[...]          # (P, B) base sim rows (patched entries are
  rows_j = rows_j_scr[...]          # masked in the loss anyway)
  lm_i = lm_i_ref[...]
  lm_j = lm_j_ref[...]
  oh_j = oh_j_ref[...]
  pk_i = pk_i_ref[...]

  hp_pair = jnp.sum(hp_i_scr[...] * hp_j_scr[...], axis=1, keepdims=True)
  hn_at_ij = jnp.sum(rows_i * oh_j, axis=1, keepdims=True)
  keep_hp = jnp.sum(pk_i * oh_j, axis=1, keepdims=True)     # (i,j) kept hard-pos?
  pos_sim = jnp.where(keep_hp > 0.0, hp_pair, hn_at_ij)     # symmetric: ij == ji
  pos_exp = jnp.exp(pos_sim / tau)                          # (P, 1)

  exp_i = jnp.where(lm_i > 0.0, 0.0, jnp.exp(rows_i / tau))  # (P, B)
  exp_j = jnp.where(lm_j > 0.0, 0.0, jnp.exp(rows_j / tau))

  if use_quantile:
    q_idx = alpha * (batch - 1)
    lower = int(math.floor(q_idx))
    upper = min(lower + 1, batch - 1)
    frac = float(q_idx - lower)
    col_iota = lax.broadcasted_iota(jnp.int32, (num_pairs, batch), 1)  # hoisted

    def rank_threshold(x):
      # torch.quantile (linear interpolation) via rank counting.  The -1.0
      # sentinel is valid because x >= 0 (exp values; masked entries are 0).
      def body(n, count_less):
        sel = (col_iota == n).astype(f32)
        col = jnp.sum(x * sel, axis=1, keepdims=True)        # x[:, n]
        return count_less + (col < x).astype(f32)

      count_less = lax.fori_loop(0, batch, body, jnp.zeros_like(x),
                                 unroll=min(8, batch))
      v_low = jnp.max(jnp.where(count_less <= lower + 0.5, x, -1.0),
                      axis=1, keepdims=True)
      v_up = jnp.max(jnp.where(count_less <= upper + 0.5, x, -1.0),
                     axis=1, keepdims=True)
      return v_low + frac * (v_up - v_low)

    thr_i = rank_threshold(exp_i)
    thr_j = rank_threshold(exp_j)
    sum_i = jnp.sum(jnp.where(exp_i >= thr_i, exp_i, 0.0), axis=1, keepdims=True)
    sum_j = jnp.sum(jnp.where(exp_j >= thr_j, exp_j, 0.0), axis=1, keepdims=True)
  else:
    sum_i = jnp.sum(exp_i, axis=1, keepdims=True)
    sum_j = jnp.sum(exp_j, axis=1, keepdims=True)

  # -log(p/(p+s)) == log(1 + s/p)
  loss_ij = jnp.log(1.0 + sum_i / pos_exp)
  loss_ji = jnp.log(1.0 + sum_j / pos_exp)
  loss_ref[...] = jnp.sum(loss_ij + loss_ji, keepdims=True) / (2.0 * num_pairs)


def _vspec(shape):
  return pl.BlockSpec(shape, lambda *_: (0,) * len(shape))


# ----------------------------------------------------------------------------
# Host-side glue: pair enumeration + index / mask-row construction, kernel call
# ----------------------------------------------------------------------------
def hard_contrastive_loss_v6_v1(embeddings, positive_pairs, stage,
                                tau=0.2, alpha=0.8):
  emb = np.asarray(embeddings, dtype=np.float32)
  pp = np.asarray(positive_pairs, dtype=np.int32).reshape(-1, 2)
  B, D = emb.shape
  P = pp.shape[0]

  # generate_pairs: all ordered pairs minus listed positives (lexicographic)
  pos_set = set((int(i), int(j)) for i, j in pp)
  neg_list = sorted(set((i, j) for i in range(B) for j in range(B) if i != j)
                    - pos_set)
  neg = np.asarray(neg_list, dtype=np.int32).reshape(-1, 2)

  # last-writer-wins partner indices (replaces dense BxB mixing matrices)
  pos_partner = np.arange(B, dtype=np.int32)
  pos_valid = np.zeros(B, np.int32)
  for i, j in pp:
    pos_partner[i] = j; pos_valid[i] = 1
    pos_partner[j] = i; pos_valid[j] = 1
  neg_partner = np.arange(B, dtype=np.int32)
  neg_valid = np.zeros(B, np.int32)
  for i, j in neg:
    neg_partner[i] = j; neg_valid[i] = 1
    neg_partner[j] = i; neg_valid[j] = 1

  # sequential scatter semantics: positives written first, negatives overwrite
  code = np.zeros((B, B), np.int8)
  code[pp[:, 0], pp[:, 1]] = 1
  code[pp[:, 1], pp[:, 0]] = 1
  if neg.shape[0] > 0:
    code[neg[:, 0], neg[:, 1]] = 2
    code[neg[:, 1], neg[:, 0]] = 2
  pos_keep = (code == 1).astype(np.float32)       # positions keeping hard-pos

  pairpos = np.zeros((B, B), np.float32)
  pairpos[pp[:, 0], pp[:, 1]] = 1.0
  pairpos[pp[:, 1], pp[:, 0]] = 1.0
  lossmask = np.clip(pairpos + np.eye(B, dtype=np.float32), 0.0, 1.0)

  ii = pp[:, 0].astype(np.int32)
  jj = pp[:, 1].astype(np.int32)
  pk_i = pos_keep[ii]                              # (P, B)
  pk_j = pos_keep[jj]
  lm_i = lossmask[ii]
  lm_j = lossmask[jj]
  oh_j = np.zeros((P, B), np.float32)
  oh_j[np.arange(P), jj] = 1.0

  # pad embedding dim to a multiple of 128 (lane-dense, MXU-aligned K)
  D_pad = ((D + 127) // 128) * 128
  emb_p = np.zeros((B, D_pad), np.float32)
  emb_p[:, :D] = emb

  use_quantile = stage in ('train', 'sanity_check')

  kernel = functools.partial(
      _hcl_kernel, tau=float(tau), alpha=float(alpha),
      use_quantile=use_quantile, batch=B, num_pairs=P)

  grid_spec = pltpu.PrefetchScalarGridSpec(
      num_scalar_prefetch=6,
      grid=(1,),
      in_specs=[
          _vspec((B, D_pad)),
          _vspec((P, B)), _vspec((P, B)),
          _vspec((P, B)), _vspec((P, B)),
          _vspec((P, B)),
      ],
      out_specs=(
          _vspec((B, D_pad)), _vspec((B, D_pad)),
          _vspec((B, B)), _vspec((1, 1)),
      ),
      scratch_shapes=[
          pltpu.VMEM((P, D_pad), jnp.float32),
          pltpu.VMEM((P, D_pad), jnp.float32),
          pltpu.VMEM((P, B), jnp.float32),
          pltpu.VMEM((P, B), jnp.float32),
          pltpu.VMEM((P, B), jnp.float32),
          pltpu.VMEM((P, B), jnp.float32),
      ],
  )

  hp_p, hn_p, sim, loss = pl.pallas_call(
      kernel,
      grid_spec=grid_spec,
      out_shape=(jax.ShapeDtypeStruct((B, D_pad), jnp.float32),
                 jax.ShapeDtypeStruct((B, D_pad), jnp.float32),
                 jax.ShapeDtypeStruct((B, B), jnp.float32),
                 jax.ShapeDtypeStruct((1, 1), jnp.float32)),
      compiler_params=pltpu.CompilerParams(
          dimension_semantics=("arbitrary",),
          vmem_limit_bytes=32 * 1024 * 1024),
  )(jnp.asarray(pos_partner), jnp.asarray(pos_valid),
    jnp.asarray(neg_partner), jnp.asarray(neg_valid),
    jnp.asarray(ii), jnp.asarray(jj),
    jnp.asarray(emb_p), jnp.asarray(pk_i), jnp.asarray(pk_j),
    jnp.asarray(lm_i), jnp.asarray(lm_j), jnp.asarray(oh_j))

  hp = hp_p[:, :D]
  hn = hn_p[:, :D]
  return (jnp.asarray(pp), jnp.asarray(neg), hp, hn, sim, loss[0, 0])


# ----------------------------------------------------------------------------
# Pure-NumPy reference (same deterministic negative-pair ordering)
# ----------------------------------------------------------------------------
def _reference(embeddings, positive_pairs, stage, tau=0.2, alpha=0.8):
  e = np.asarray(embeddings, np.float64)
  pp = np.asarray(positive_pairs, np.int64).reshape(-1, 2)
  B = e.shape[0]
  pos_set = set((int(i), int(j)) for i, j in pp)
  neg = np.asarray(sorted(set((i, j) for i in range(B) for j in range(B)
                              if i != j) - pos_set), np.int64).reshape(-1, 2)

  hp = np.zeros_like(e)
  for i, j in pp:
    hp[i] = 1.5 * e[i] - 0.5 * e[j]
    hp[j] = 1.5 * e[j] - 0.5 * e[i]
  hn = np.zeros_like(e)
  for i, j in neg:
    hn[i] = 0.5 * e[i] + 0.5 * e[j]
    hn[j] = 0.5 * e[j] + 0.5 * e[i]

  def cos(x):
    nrm = np.sqrt(np.maximum(np.sum(x * x, axis=1, keepdims=True), 1e-16))
    xn = x / nrm
    return xn @ xn.T

  sim = cos(e)
  sp = cos(hp)
  sn = cos(hn)
  sim[pp[:, 0], pp[:, 1]] = sp[pp[:, 0], pp[:, 1]]
  sim[pp[:, 1], pp[:, 0]] = sp[pp[:, 1], pp[:, 0]]
  if neg.shape[0] > 0:
    sim[neg[:, 0], neg[:, 1]] = sn[neg[:, 0], neg[:, 1]]
    sim[neg[:, 1], neg[:, 0]] = sn[neg[:, 1], neg[:, 0]]

  ii, jj = pp[:, 0], pp[:, 1]
  mask = np.eye(B, dtype=bool)
  mask[ii, jj] = True
  mask[jj, ii] = True
  exp_sim = np.exp(sim / tau)
  exp_m = np.where(mask, 0.0, exp_sim)
  pos_ij = exp_sim[ii, jj]
  pos_ji = exp_sim[jj, ii]
  exp_i = exp_m[ii]
  exp_j = exp_m[jj]
  if stage in ('train', 'sanity_check'):
    ti = np.quantile(exp_i, alpha, axis=1, keepdims=True)   # linear == torch
    tj = np.quantile(exp_j, alpha, axis=1, keepdims=True)
    si = np.where(exp_i >= ti, exp_i, 0.0).sum(1)
    sj = np.where(exp_j >= tj, exp_j, 0.0).sum(1)
  else:
    si = exp_i.sum(1)
    sj = exp_j.sum(1)
  lij = -np.log(pos_ij / (pos_ij + si))
  lji = -np.log(pos_ji / (pos_ji + sj))
  loss = (lij + lji).sum() / (2 * pp.shape[0])
  return hp, hn, sim, loss


if __name__ == "__main__":
  B, D = 8, 32
  key = jax.random.PRNGKey(0)
  embeddings = jax.random.normal(key, (B, D), dtype=jnp.float32)
  positive_pairs = np.array([[0, 1], [2, 3], [4, 5], [6, 7]], dtype=np.int32)

  ok = True
  for stage in ("train", "val"):
    pp_out, neg_out, hp, hn, sim, loss = hard_contrastive_loss_v6_v1(
        embeddings, positive_pairs, stage)
    jax.block_until_ready((hp, hn, sim, loss))

    hp_r, hn_r, sim_r, loss_r = _reference(np.asarray(embeddings),
                                           positive_pairs, stage)
    np.testing.assert_allclose(np.asarray(hp), hp_r, rtol=1e-4, atol=1e-4)
    np.testing.assert_allclose(np.asarray(hn), hn_r, rtol=1e-4, atol=1e-4)
    np.testing.assert_allclose(np.asarray(sim), sim_r, rtol=1e-4, atol=1e-4)
    np.testing.assert_allclose(float(loss), float(loss_r),
                               rtol=1e-4, atol=1e-4)
  if ok:
    print("KERNEL_OK")
</pallas_src>

<mosaic_0001>
module attributes {stable_mosaic.version = 11 : i64} {
  func.func @_hcl_kernel(%arg0: i32, %arg1: memref<8xi32, #tpu.memory_space<smem>>, %arg2: memref<8xi32, #tpu.memory_space<smem>>, %arg3: memref<8xi32, #tpu.memory_space<smem>>, %arg4: memref<8xi32, #tpu.memory_space<smem>>, %arg5: memref<4xi32, #tpu.memory_space<smem>>, %arg6: memref<4xi32, #tpu.memory_space<smem>>, %arg7: memref<8x128xf32, #tpu.memory_space<vmem>>, %arg8: memref<4x8xf32, #tpu.memory_space<vmem>>, %arg9: memref<4x8xf32, #tpu.memory_space<vmem>>, %arg10: memref<4x8xf32, #tpu.memory_space<vmem>>, %arg11: memref<4x8xf32, #tpu.memory_space<vmem>>, %arg12: memref<4x8xf32, #tpu.memory_space<vmem>>, %arg13: memref<8x128xf32, #tpu.memory_space<vmem>>, %arg14: memref<8x128xf32, #tpu.memory_space<vmem>>, %arg15: memref<8x8xf32, #tpu.memory_space<vmem>>, %arg16: memref<1x1xf32, #tpu.memory_space<vmem>>, %arg17: memref<4x128xf32, #tpu.memory_space<vmem>>, %arg18: memref<4x128xf32, #tpu.memory_space<vmem>>, %arg19: memref<4x8xf32, #tpu.memory_space<vmem>>, %arg20: memref<4x8xf32, #tpu.memory_space<vmem>>, %arg21: memref<4x8xf32, #tpu.memory_space<vmem>>, %arg22: memref<4x8xf32, #tpu.memory_space<vmem>>) attributes {dimension_semantics = [#tpu.dimension_semantics<arbitrary>], iteration_bounds = array<i64: 1>, scalar_prefetch = 6 : i64, scratch_operands = 6 : i64, tpu.core_type = #tpu.core_type<tc>, window_params = [{pipeline_mode = #tpu.pipeline_mode<synchronous>, transform_indices = @transform_0, window_bounds = array<i64: 8, 128>}, {pipeline_mode = #tpu.pipeline_mode<synchronous>, transform_indices = @transform_1, window_bounds = array<i64: 4, 8>}, {pipeline_mode = #tpu.pipeline_mode<synchronous>, transform_indices = @transform_2, window_bounds = array<i64: 4, 8>}, {pipeline_mode = #tpu.pipeline_mode<synchronous>, transform_indices = @transform_3, window_bounds = array<i64: 4, 8>}, {pipeline_mode = #tpu.pipeline_mode<synchronous>, transform_indices = @transform_4, window_bounds = array<i64: 4, 8>}, {pipeline_mode = #tpu.pipeline_mode<synchronous>, transform_indices = @transform_5, window_bounds = array<i64: 4, 8>}, {pipeline_mode = #tpu.pipeline_mode<synchronous>, transform_indices = @transform_6, window_bounds = array<i64: 8, 128>}, {pipeline_mode = #tpu.pipeline_mode<synchronous>, transform_indices = @transform_7, window_bounds = array<i64: 8, 128>}, {pipeline_mode = #tpu.pipeline_mode<synchronous>, transform_indices = @transform_8, window_bounds = array<i64: 8, 8>}, {pipeline_mode = #tpu.pipeline_mode<synchronous>, transform_indices = @transform_9, window_bounds = array<i64: 1, 1>}]} {
    %c0_i32 = arith.constant 0 : i32
    %c8_i32 = arith.constant 8 : i32
    %0 = arith.addi %c0_i32, %c8_i32 : i32
    %c1_i32 = arith.constant 1 : i32
    scf.for %arg23 = %c0_i32 to %0 step %c1_i32  : i32 {
      %335 = arith.index_cast %arg23 : i32 to index
      %c0_113 = arith.constant 0 : index
      %336 = vector.load %arg7[%335, %c0_113] : memref<8x128xf32, #tpu.memory_space<vmem>>, vector<1x128xf32>
      %337 = arith.index_cast %arg23 : i32 to index
      %338 = memref.load %arg1[%337] : memref<8xi32, #tpu.memory_space<smem>>
      %339 = arith.index_cast %arg23 : i32 to index
      %340 = memref.load %arg3[%339] : memref<8xi32, #tpu.memory_space<smem>>
      %341 = arith.index_cast %338 : i32 to index
      %c0_114 = arith.constant 0 : index
      %342 = vector.load %arg7[%341, %c0_114] : memref<8x128xf32, #tpu.memory_space<vmem>>, vector<1x128xf32>
      %343 = arith.index_cast %340 : i32 to index
      %c0_115 = arith.constant 0 : index
      %344 = vector.load %arg7[%343, %c0_115] : memref<8x128xf32, #tpu.memory_space<vmem>>, vector<1x128xf32>
      %345 = arith.index_cast %arg23 : i32 to index
      %346 = memref.load %arg2[%345] : memref<8xi32, #tpu.memory_space<smem>>
      %347 = arith.sitofp %346 : i32 to f32
      %348 = arith.index_cast %arg23 : i32 to index
      %349 = memref.load %arg4[%348] : memref<8xi32, #tpu.memory_space<smem>>
      %350 = arith.sitofp %349 : i32 to f32
      %cst_116 = arith.constant 1.500000e+00 : f32
      %351 = vector.broadcast %cst_116 : f32 to vector<1x128xf32>
      %352 = arith.mulf %351, %336 : vector<1x128xf32>
      %cst_117 = arith.constant 5.000000e-01 : f32
      %353 = vector.broadcast %cst_117 : f32 to vector<1x128xf32>
      %354 = arith.mulf %353, %342 : vector<1x128xf32>
      %355 = arith.subf %352, %354 : vector<1x128xf32>
      %356 = vector.broadcast %347 : f32 to vector<1x128xf32>
      %357 = arith.mulf %356, %355 : vector<1x128xf32>
      %358 = arith.index_cast %arg23 : i32 to index
      %c0_118 = arith.constant 0 : index
      %359 = vector.load %arg13[%358, %c0_118] : memref<8x128xf32, #tpu.memory_space<vmem>>, vector<1x128xf32>
      tpu.vector_store %arg13[%358, %c0_118], %357 {strides = array<i32>} : memref<8x128xf32, #tpu.memory_space<vmem>>, vector<1x128xf32>,
      %cst_119 = arith.constant 5.000000e-01 : f32
      %360 = vector.broadcast %cst_119 : f32 to vector<1x128xf32>
      %361 = arith.mulf %360, %336 : vector<1x128xf32>
      %cst_120 = arith.constant 5.000000e-01 : f32
      %362 = vector.broadcast %cst_120 : f32 to vector<1x128xf32>
      %363 = arith.mulf %362, %344 : vector<1x128xf32>
      %364 = arith.addf %361, %363 : vector<1x128xf32>
      %365 = vector.broadcast %350 : f32 to vector<1x128xf32>
      %366 = arith.mulf %365, %364 : vector<1x128xf32>
      %367 = arith.index_cast %arg23 : i32 to index
      %c0_121 = arith.constant 0 : index
      %368 = vector.load %arg14[%367, %c0_121] : memref<8x128xf32, #tpu.memory_space<vmem>>, vector<1x128xf32>
      tpu.vector_store %arg14[%367, %c0_121], %366 {strides = array<i32>} : memref<8x128xf32, #tpu.memory_space<vmem>>, vector<1x128xf32>,
    }
    %c8_i32_0 = arith.constant 8 : i32
    %c0 = arith.constant 0 : index
    %c0_1 = arith.constant 0 : index
    %1 = vector.load %arg7[%c0, %c0_1] : memref<8x128xf32, #tpu.memory_space<vmem>>, vector<8x128xf32>
    %c0_2 = arith.constant 0 : index
    %c0_3 = arith.constant 0 : index
    %2 = vector.load %arg14[%c0_2, %c0_3] : memref<8x128xf32, #tpu.memory_space<vmem>>, vector<8x128xf32>
    %3 = arith.mulf %2, %2 : vector<8x128xf32>
    %cst = arith.constant dense<0.000000e+00> : vector<8xf32>
    %4 = vector.multi_reduction <add>, %3, %cst [1] : vector<8x128xf32> to vector<8xf32>
    %5 = vector.shape_cast %4 : vector<8xf32> to vector<8x1xf32>
    %cst_4 = arith.constant 1.000000e-16 : f32
    %6 = vector.broadcast %cst_4 : f32 to vector<8x1xf32>
    %7 = arith.maximumf %5, %6 : vector<8x1xf32>
    %8 = math.sqrt %7 : vector<8x1xf32>
    %9 = vector.broadcast %8 : vector<8x1xf32> to vector<8x128xf32>
    %10 = arith.divf %2, %9 : vector<8x128xf32>
    %c0_5 = arith.constant 0 : index
    %c0_6 = arith.constant 0 : index
    %11 = vector.load %arg13[%c0_5, %c0_6] : memref<8x128xf32, #tpu.memory_space<vmem>>, vector<8x128xf32>
    %12 = arith.mulf %11, %11 : vector<8x128xf32>
    %cst_7 = arith.constant dense<0.000000e+00> : vector<8xf32>
    %13 = vector.multi_reduction <add>, %12, %cst_7 [1] : vector<8x128xf32> to vector<8xf32>
    %14 = vector.shape_cast %13 : vector<8xf32> to vector<8x1xf32>
    %cst_8 = arith.constant 1.000000e-16 : f32
    %15 = vector.broadcast %cst_8 : f32 to vector<8x1xf32>
    %16 = arith.maximumf %14, %15 : vector<8x1xf32>
    %17 = math.sqrt %16 : vector<8x1xf32>
    %18 = vector.broadcast %17 : vector<8x1xf32> to vector<8x128xf32>
    %19 = arith.divf %11, %18 : vector<8x128xf32>
    %20 = arith.mulf %1, %1 : vector<8x128xf32>
    %cst_9 = arith.constant dense<0.000000e+00> : vector<8xf32>
    %21 = vector.multi_reduction <add>, %20, %cst_9 [1] : vector<8x128xf32> to vector<8xf32>
    %22 = vector.shape_cast %21 : vector<8xf32> to vector<8x1xf32>
    %cst_10 = arith.constant 1.000000e-16 : f32
    %23 = vector.broadcast %cst_10 : f32 to vector<8x1xf32>
    %24 = arith.maximumf %22, %23 : vector<8x1xf32>
    %25 = arith.divf %22, %24 : vector<8x1xf32>
    %cst_11 = arith.constant dense<0.000000e+00> : vector<8x8xf32>
    %26 = tpu.matmul %10, %10, %cst_11 {dimension_numbers = #tpu.dot_dimension_numbers<[1], [1], [0], [0], [0, 0, 1, 0], [], []>} : vector<8x128xf32>, vector<8x128xf32>, vector<8x8xf32> -> vector<8x8xf32>
    %27 = tpu.iota {dimensions = array<i32: 0>} : vector<8x8xi32>
    %28 = tpu.iota {dimensions = array<i32: 1>} : vector<8x8xi32>
    %29 = arith.cmpi eq, %27, %28 : vector<8x8xi32>
    %30 = vector.shape_cast %25 : vector<8x1xf32> to vector<8x1xf32>
    %31 = vector.broadcast %30 : vector<8x1xf32> to vector<8x8xf32>
    %32 = arith.select %29, %31, %26 : vector<8x8xi1>, vector<8x8xf32>
    %c0_12 = arith.constant 0 : index
    %c0_13 = arith.constant 0 : index
    %33 = vector.load %arg15[%c0_12, %c0_13] : memref<8x8xf32, #tpu.memory_space<vmem>>, vector<8x8xf32>
    tpu.vector_store %arg15[%c0_12, %c0_13], %32 {strides = array<i32>} : memref<8x8xf32, #tpu.memory_space<vmem>>, vector<8x8xf32>,
    %c0_i32_14 = arith.constant 0 : i32
    %c4_i32 = arith.constant 4 : i32
    %34 = arith.addi %c0_i32_14, %c4_i32 : i32
    %c1_i32_15 = arith.constant 1 : i32
    scf.for %arg23 = %c0_i32_14 to %34 step %c1_i32_15  : i32 {
      %335 = arith.index_cast %arg23 : i32 to index
      %336 = memref.load %arg5[%335] : memref<4xi32, #tpu.memory_space<smem>>
      %337 = arith.index_cast %arg23 : i32 to index
      %338 = memref.load %arg6[%337] : memref<4xi32, #tpu.memory_space<smem>>
      %339 = arith.index_cast %336 : i32 to index
      %c0_113 = arith.constant 0 : index
      %340 = vector.load %arg13[%339, %c0_113] : memref<8x128xf32, #tpu.memory_space<vmem>>, vector<1x128xf32>
      %341 = arith.index_cast %338 : i32 to index
      %c0_114 = arith.constant 0 : index
      %342 = vector.load %arg13[%341, %c0_114] : memref<8x128xf32, #tpu.memory_space<vmem>>, vector<1x128xf32>
      %343 = arith.mulf %340, %340 : vector<1x128xf32>
      %cst_115 = arith.constant dense<0.000000e+00> : vector<1xf32>
      %344 = vector.multi_reduction <add>, %343, %cst_115 [1] : vector<1x128xf32> to vector<1xf32>
      %345 = vector.shape_cast %344 : vector<1xf32> to vector<1x1xf32>
      %cst_116 = arith.constant 1.000000e-16 : f32
      %346 = vector.broadcast %cst_116 : f32 to vector<1x1xf32>
      %347 = arith.maximumf %345, %346 : vector<1x1xf32>
      %348 = math.sqrt %347 : vector<1x1xf32>
      %349 = vector.broadcast %348 : vector<1x1xf32> to vector<1x128xf32>
      %350 = arith.divf %340, %349 : vector<1x128xf32>
      %351 = arith.mulf %342, %342 : vector<1x128xf32>
      %cst_117 = arith.constant dense<0.000000e+00> : vector<1xf32>
      %352 = vector.multi_reduction <add>, %351, %cst_117 [1] : vector<1x128xf32> to vector<1xf32>
      %353 = vector.shape_cast %352 : vector<1xf32> to vector<1x1xf32>
      %cst_118 = arith.constant 1.000000e-16 : f32
      %354 = vector.broadcast %cst_118 : f32 to vector<1x1xf32>
      %355 = arith.maximumf %353, %354 : vector<1x1xf32>
      %356 = math.sqrt %355 : vector<1x1xf32>
      %357 = vector.broadcast %356 : vector<1x1xf32> to vector<1x128xf32>
      %358 = arith.divf %342, %357 : vector<1x128xf32>
      %359 = arith.index_cast %arg23 : i32 to index
      %c0_119 = arith.constant 0 : index
      %360 = vector.load %arg17[%359, %c0_119] : memref<4x128xf32, #tpu.memory_space<vmem>>, vector<1x128xf32>
      tpu.vector_store %arg17[%359, %c0_119], %350 {strides = array<i32>} : memref<4x128xf32, #tpu.memory_space<vmem>>, vector<1x128xf32>,
      %361 = arith.index_cast %arg23 : i32 to index
      %c0_120 = arith.constant 0 : index
      %362 = vector.load %arg18[%361, %c0_120] : memref<4x128xf32, #tpu.memory_space<vmem>>, vector<1x128xf32>
      tpu.vector_store %arg18[%361, %c0_120], %358 {strides = array<i32>} : memref<4x128xf32, #tpu.memory_space<vmem>>, vector<1x128xf32>,
      %363 = arith.index_cast %336 : i32 to index
      %c0_121 = arith.constant 0 : index
      %364 = vector.load %arg15[%363, %c0_121] : memref<8x8xf32, #tpu.memory_space<vmem>>, vector<1x8xf32>
      %365 = arith.index_cast %arg23 : i32 to index
      %c0_122 = arith.constant 0 : index
      %366 = vector.load %arg21[%365, %c0_122] : memref<4x8xf32, #tpu.memory_space<vmem>>, vector<1x8xf32>
      tpu.vector_store %arg21[%365, %c0_122], %364 {strides = array<i32>} : memref<4x8xf32, #tpu.memory_space<vmem>>, vector<1x8xf32>,
      %367 = arith.index_cast %338 : i32 to index
      %c0_123 = arith.constant 0 : index
      %368 = vector.load %arg15[%367, %c0_123] : memref<8x8xf32, #tpu.memory_space<vmem>>, vector<1x8xf32>
      %369 = arith.index_cast %arg23 : i32 to index
      %c0_124 = arith.constant 0 : index
      %370 = vector.load %arg22[%369, %c0_124] : memref<4x8xf32, #tpu.memory_space<vmem>>, vector<1x8xf32>
      tpu.vector_store %arg22[%369, %c0_124], %368 {strides = array<i32>} : memref<4x8xf32, #tpu.memory_space<vmem>>, vector<1x8xf32>,
    }
    %c4_i32_16 = arith.constant 4 : i32
    %c0_17 = arith.constant 0 : index
    %c0_18 = arith.constant 0 : index
    %35 = vector.load %arg17[%c0_17, %c0_18] : memref<4x128xf32, #tpu.memory_space<vmem>>, vector<4x128xf32>
    %cst_19 = arith.constant dense<0.000000e+00> : vector<4x8xf32>
    %36 = tpu.matmul %35, %19, %cst_19 {dimension_numbers = #tpu.dot_dimension_numbers<[1], [1], [0], [0], [0, 0, 1, 0], [], []>} : vector<4x128xf32>, vector<8x128xf32>, vector<4x8xf32> -> vector<4x8xf32>
    %c0_20 = arith.constant 0 : index
    %c0_21 = arith.constant 0 : index
    %37 = vector.load %arg19[%c0_20, %c0_21] : memref<4x8xf32, #tpu.memory_space<vmem>>, vector<4x8xf32>
    tpu.vector_store %arg19[%c0_20, %c0_21], %36 {strides = array<i32>} : memref<4x8xf32, #tpu.memory_space<vmem>>, vector<4x8xf32>,
    %c0_22 = arith.constant 0 : index
    %c0_23 = arith.constant 0 : index
    %38 = vector.load %arg18[%c0_22, %c0_23] : memref<4x128xf32, #tpu.memory_space<vmem>>, vector<4x128xf32>
    %cst_24 = arith.constant dense<0.000000e+00> : vector<4x8xf32>
    %39 = tpu.matmul %38, %19, %cst_24 {dimension_numbers = #tpu.dot_dimension_numbers<[1], [1], [0], [0], [0, 0, 1, 0], [], []>} : vector<4x128xf32>, vector<8x128xf32>, vector<4x8xf32> -> vector<4x8xf32>
    %c0_25 = arith.constant 0 : index
    %c0_26 = arith.constant 0 : index
    %40 = vector.load %arg20[%c0_25, %c0_26] : memref<4x8xf32, #tpu.memory_space<vmem>>, vector<4x8xf32>
    tpu.vector_store %arg20[%c0_25, %c0_26], %39 {strides = array<i32>} : memref<4x8xf32, #tpu.memory_space<vmem>>, vector<4x8xf32>,
    %c0_i32_27 = arith.constant 0 : i32
    %c4_i32_28 = arith.constant 4 : i32
    %41 = arith.addi %c0_i32_27, %c4_i32_28 : i32
    %c1_i32_29 = arith.constant 1 : i32
    scf.for %arg23 = %c0_i32_27 to %41 step %c1_i32_29  : i32 {
      %335 = arith.index_cast %arg23 : i32 to index
      %336 = memref.load %arg5[%335] : memref<4xi32, #tpu.memory_space<smem>>
      %337 = arith.index_cast %arg23 : i32 to index
      %338 = memref.load %arg6[%337] : memref<4xi32, #tpu.memory_space<smem>>
      %339 = arith.index_cast %336 : i32 to index
      %c0_113 = arith.constant 0 : index
      %340 = vector.load %arg15[%339, %c0_113] : memref<8x8xf32, #tpu.memory_space<vmem>>, vector<1x8xf32>
      %341 = arith.index_cast %338 : i32 to index
      %c0_114 = arith.constant 0 : index
      %342 = vector.load %arg15[%341, %c0_114] : memref<8x8xf32, #tpu.memory_space<vmem>>, vector<1x8xf32>
      %343 = arith.index_cast %arg23 : i32 to index
      %c0_115 = arith.constant 0 : index
      %344 = vector.load %arg8[%343, %c0_115] : memref<4x8xf32, #tpu.memory_space<vmem>>, vector<1x8xf32>
      %cst_116 = arith.constant 0.000000e+00 : f32
      %345 = vector.broadcast %cst_116 : f32 to vector<1x8xf32>
      %346 = arith.cmpf ogt, %344, %345 : vector<1x8xf32>
      %347 = arith.index_cast %arg23 : i32 to index
      %c0_117 = arith.constant 0 : index
      %348 = vector.load %arg19[%347, %c0_117] : memref<4x8xf32, #tpu.memory_space<vmem>>, vector<1x8xf32>
      %349 = arith.select %346, %348, %340 : vector<1x8xi1>, vector<1x8xf32>
      %350 = arith.index_cast %arg23 : i32 to index
      %c0_118 = arith.constant 0 : index
      %351 = vector.load %arg9[%350, %c0_118] : memref<4x8xf32, #tpu.memory_space<vmem>>, vector<1x8xf32>
      %cst_119 = arith.constant 0.000000e+00 : f32
      %352 = vector.broadcast %cst_119 : f32 to vector<1x8xf32>
      %353 = arith.cmpf ogt, %351, %352 : vector<1x8xf32>
      %354 = arith.index_cast %arg23 : i32 to index
      %c0_120 = arith.constant 0 : index
      %355 = vector.load %arg20[%354, %c0_120] : memref<4x8xf32, #tpu.memory_space<vmem>>, vector<1x8xf32>
      %356 = arith.select %353, %355, %342 : vector<1x8xi1>, vector<1x8xf32>
      %357 = arith.index_cast %336 : i32 to index
      %c0_121 = arith.constant 0 : index
      %358 = vector.load %arg15[%357, %c0_121] : memref<8x8xf32, #tpu.memory_space<vmem>>, vector<1x8xf32>
      tpu.vector_store %arg15[%357, %c0_121], %349 {strides = array<i32>} : memref<8x8xf32, #tpu.memory_space<vmem>>, vector<1x8xf32>,
      %359 = arith.index_cast %338 : i32 to index
      %c0_122 = arith.constant 0 : index
      %360 = vector.load %arg15[%359, %c0_122] : memref<8x8xf32, #tpu.memory_space<vmem>>, vector<1x8xf32>
      tpu.vector_store %arg15[%359, %c0_122], %356 {strides = array<i32>} : memref<8x8xf32, #tpu.memory_space<vmem>>, vector<1x8xf32>,
    }
    %c4_i32_30 = arith.constant 4 : i32
    %c0_31 = arith.constant 0 : index
    %c0_32 = arith.constant 0 : index
    %42 = vector.load %arg21[%c0_31, %c0_32] : memref<4x8xf32, #tpu.memory_space<vmem>>, vector<4x8xf32>
    %c0_33 = arith.constant 0 : index
    %c0_34 = arith.constant 0 : index
    %43 = vector.load %arg22[%c0_33, %c0_34] : memref<4x8xf32, #tpu.memory_space<vmem>>, vector<4x8xf32>
    %c0_35 = arith.constant 0 : index
    %c0_36 = arith.constant 0 : index
    %44 = vector.load %arg10[%c0_35, %c0_36] : memref<4x8xf32, #tpu.memory_space<vmem>>, vector<4x8xf32>
    %c0_37 = arith.constant 0 : index
    %c0_38 = arith.constant 0 : index
    %45 = vector.load %arg11[%c0_37, %c0_38] : memref<4x8xf32, #tpu.memory_space<vmem>>, vector<4x8xf32>
    %c0_39 = arith.constant 0 : index
    %c0_40 = arith.constant 0 : index
    %46 = vector.load %arg12[%c0_39, %c0_40] : memref<4x8xf32, #tpu.memory_space<vmem>>, vector<4x8xf32>
    %c0_41 = arith.constant 0 : index
    %c0_42 = arith.constant 0 : index
    %47 = vector.load %arg8[%c0_41, %c0_42] : memref<4x8xf32, #tpu.memory_space<vmem>>, vector<4x8xf32>
    %c0_43 = arith.constant 0 : index
    %c0_44 = arith.constant 0 : index
    %48 = vector.load %arg17[%c0_43, %c0_44] : memref<4x128xf32, #tpu.memory_space<vmem>>, vector<4x128xf32>
    %c0_45 = arith.constant 0 : index
    %c0_46 = arith.constant 0 : index
    %49 = vector.load %arg18[%c0_45, %c0_46] : memref<4x128xf32, #tpu.memory_space<vmem>>, vector<4x128xf32>
    %50 = arith.mulf %48, %49 : vector<4x128xf32>
    %cst_47 = arith.constant dense<0.000000e+00> : vector<4xf32>
    %51 = vector.multi_reduction <add>, %50, %cst_47 [1] : vector<4x128xf32> to vector<4xf32>
    %52 = vector.shape_cast %51 : vector<4xf32> to vector<4x1xf32>
    %53 = arith.mulf %42, %46 : vector<4x8xf32>
    %cst_48 = arith.constant dense<0.000000e+00> : vector<4xf32>
    %54 = vector.multi_reduction <add>, %53, %cst_48 [1] : vector<4x8xf32> to vector<4xf32>
    %55 = vector.shape_cast %54 : vector<4xf32> to vector<4x1xf32>
    %56 = arith.mulf %47, %46 : vector<4x8xf32>
    %cst_49 = arith.constant dense<0.000000e+00> : vector<4xf32>
    %57 = vector.multi_reduction <add>, %56, %cst_49 [1] : vector<4x8xf32> to vector<4xf32>
    %58 = vector.shape_cast %57 : vector<4xf32> to vector<4x1xf32>
    %cst_50 = arith.constant 0.000000e+00 : f32
    %59 = vector.broadcast %cst_50 : f32 to vector<4x1xf32>
    %60 = arith.cmpf ogt, %58, %59 : vector<4x1xf32>
    %61 = arith.select %60, %52, %55 : vector<4x1xi1>, vector<4x1xf32>
    %cst_51 = arith.constant 2.000000e-01 : f32
    %62 = vector.broadcast %cst_51 : f32 to vector<4x1xf32>
    %63 = arith.divf %61, %62 : vector<4x1xf32>
    %64 = math.exp %63 : vector<4x1xf32>
    %cst_52 = arith.constant 0.000000e+00 : f32
    %65 = vector.broadcast %cst_52 : f32 to vector<4x8xf32>
    %66 = arith.cmpf ogt, %44, %65 : vector<4x8xf32>
    %cst_53 = arith.constant 2.000000e-01 : f32
    %67 = vector.broadcast %cst_53 : f32 to vector<4x8xf32>
    %68 = arith.divf %42, %67 : vector<4x8xf32>
    %69 = math.exp %68 : vector<4x8xf32>
    %cst_54 = arith.constant 0.000000e+00 : f32
    %70 = vector.broadcast %cst_54 : f32 to vector<4x8xf32>
    %71 = arith.select %66, %70, %69 : vector<4x8xi1>, vector<4x8xf32>
    %cst_55 = arith.constant 0.000000e+00 : f32
    %72 = vector.broadcast %cst_55 : f32 to vector<4x8xf32>
    %73 = arith.cmpf ogt, %45, %72 : vector<4x8xf32>
    %cst_56 = arith.constant 2.000000e-01 : f32
    %74 = vector.broadcast %cst_56 : f32 to vector<4x8xf32>
    %75 = arith.divf %43, %74 : vector<4x8xf32>
    %76 = math.exp %75 : vector<4x8xf32>
    %cst_57 = arith.constant 0.000000e+00 : f32
    %77 = vector.broadcast %cst_57 : f32 to vector<4x8xf32>
    %78 = arith.select %73, %77, %76 : vector<4x8xi1>, vector<4x8xf32>
    %79 = tpu.iota {dimensions = array<i32: 1>} : vector<4x8xi32>
    %cst_58 = arith.constant 0.000000e+00 : f32
    %80 = vector.broadcast %cst_58 : f32 to vector<4x8xf32>
    %c0_i32_59 = arith.constant 0 : i32
    %81 = vector.broadcast %c0_i32_59 : i32 to vector<4x8xi32>
    %82 = arith.cmpi eq, %79, %81 : vector<4x8xi32>
    %83 = arith.extui %82 : vector<4x8xi1> to vector<4x8xi32>
    %84 = arith.sitofp %83 : vector<4x8xi32> to vector<4x8xf32>
    %85 = arith.mulf %71, %84 : vector<4x8xf32>
    %cst_60 = arith.constant dense<0.000000e+00> : vector<4xf32>
    %86 = vector.multi_reduction <add>, %85, %cst_60 [1] : vector<4x8xf32> to vector<4xf32>
    %87 = vector.shape_cast %86 : vector<4xf32> to vector<4x1xf32>
    %88 = vector.broadcast %87 : vector<4x1xf32> to vector<4x8xf32>
    %89 = arith.cmpf olt, %88, %71 : vector<4x8xf32>
    %90 = arith.extui %89 : vector<4x8xi1> to vector<4x8xi32>
    %91 = arith.sitofp %90 : vector<4x8xi32> to vector<4x8xf32>
    %92 = arith.addf %80, %91 : vector<4x8xf32>
    %c1_i32_61 = arith.constant 1 : i32
    %93 = vector.broadcast %c1_i32_61 : i32 to vector<4x8xi32>
    %94 = arith.cmpi eq, %79, %93 : vector<4x8xi32>
    %95 = arith.extui %94 : vector<4x8xi1> to vector<4x8xi32>
    %96 = arith.sitofp %95 : vector<4x8xi32> to vector<4x8xf32>
    %97 = arith.mulf %71, %96 : vector<4x8xf32>
    %cst_62 = arith.constant dense<0.000000e+00> : vector<4xf32>
    %98 = vector.multi_reduction <add>, %97, %cst_62 [1] : vector<4x8xf32> to vector<4xf32>
    %99 = vector.shape_cast %98 : vector<4xf32> to vector<4x1xf32>
    %100 = vector.broadcast %99 : vector<4x1xf32> to vector<4x8xf32>
    %101 = arith.cmpf olt, %100, %71 : vector<4x8xf32>
    %102 = arith.extui %101 : vector<4x8xi1> to vector<4x8xi32>
    %103 = arith.sitofp %102 : vector<4x8xi32> to vector<4x8xf32>
    %104 = arith.addf %92, %103 : vector<4x8xf32>
    %c2_i32 = arith.constant 2 : i32
    %105 = vector.broadcast %c2_i32 : i32 to vector<4x8xi32>
    %106 = arith.cmpi eq, %79, %105 : vector<4x8xi32>
    %107 = arith.extui %106 : vector<4x8xi1> to vector<4x8xi32>
    %108 = arith.sitofp %107 : vector<4x8xi32> to vector<4x8xf32>
    %109 = arith.mulf %71, %108 : vector<4x8xf32>
    %cst_63 = arith.constant dense<0.000000e+00> : vector<4xf32>
    %110 = vector.multi_reduction <add>, %109, %cst_63 [1] : vector<4x8xf32> to vector<4xf32>
    %111 = vector.shape_cast %110 : vector<4xf32> to vector<4x1xf32>
    %112 = vector.broadcast %111 : vector<4x1xf32> to vector<4x8xf32>
    %113 = arith.cmpf olt, %112, %71 : vector<4x8xf32>
    %114 = arith.extui %113 : vector<4x8xi1> to vector<4x8xi32>
    %115 = arith.sitofp %114 : vector<4x8xi32> to vector<4x8xf32>
    %116 = arith.addf %104, %115 : vector<4x8xf32>
    %c3_i32 = arith.constant 3 : i32
    %117 = vector.broadcast %c3_i32 : i32 to vector<4x8xi32>
    %118 = arith.cmpi eq, %79, %117 : vector<4x8xi32>
    %119 = arith.extui %118 : vector<4x8xi1> to vector<4x8xi32>
    %120 = arith.sitofp %119 : vector<4x8xi32> to vector<4x8xf32>
    %121 = arith.mulf %71, %120 : vector<4x8xf32>
    %cst_64 = arith.constant dense<0.000000e+00> : vector<4xf32>
    %122 = vector.multi_reduction <add>, %121, %cst_64 [1] : vector<4x8xf32> to vector<4xf32>
    %123 = vector.shape_cast %122 : vector<4xf32> to vector<4x1xf32>
    %124 = vector.broadcast %123 : vector<4x1xf32> to vector<4x8xf32>
    %125 = arith.cmpf olt, %124, %71 : vector<4x8xf32>
    %126 = arith.extui %125 : vector<4x8xi1> to vector<4x8xi32>
    %127 = arith.sitofp %126 : vector<4x8xi32> to vector<4x8xf32>
    %128 = arith.addf %116, %127 : vector<4x8xf32>
    %c4_i32_65 = arith.constant 4 : i32
    %129 = vector.broadcast %c4_i32_65 : i32 to vector<4x8xi32>
    %130 = arith.cmpi eq, %79, %129 : vector<4x8xi32>
    %131 = arith.extui %130 : vector<4x8xi1> to vector<4x8xi32>
    %132 = arith.sitofp %131 : vector<4x8xi32> to vector<4x8xf32>
    %133 = arith.mulf %71, %132 : vector<4x8xf32>
    %cst_66 = arith.constant dense<0.000000e+00> : vector<4xf32>
    %134 = vector.multi_reduction <add>, %133, %cst_66 [1] : vector<4x8xf32> to vector<4xf32>
    %135 = vector.shape_cast %134 : vector<4xf32> to vector<4x1xf32>
    %136 = vector.broadcast %135 : vector<4x1xf32> to vector<4x8xf32>
    %137 = arith.cmpf olt, %136, %71 : vector<4x8xf32>
    %138 = arith.extui %137 : vector<4x8xi1> to vector<4x8xi32>
    %139 = arith.sitofp %138 : vector<4x8xi32> to vector<4x8xf32>
    %140 = arith.addf %128, %139 : vector<4x8xf32>
    %c5_i32 = arith.constant 5 : i32
    %141 = vector.broadcast %c5_i32 : i32 to vector<4x8xi32>
    %142 = arith.cmpi eq, %79, %141 : vector<4x8xi32>
    %143 = arith.extui %142 : vector<4x8xi1> to vector<4x8xi32>
    %144 = arith.sitofp %143 : vector<4x8xi32> to vector<4x8xf32>
    %145 = arith.mulf %71, %144 : vector<4x8xf32>
    %cst_67 = arith.constant dense<0.000000e+00> : vector<4xf32>
    %146 = vector.multi_reduction <add>, %145, %cst_67 [1] : vector<4x8xf32> to vector<4xf32>
    %147 = vector.shape_cast %146 : vector<4xf32> to vector<4x1xf32>
    %148 = vector.broadcast %147 : vector<4x1xf32> to vector<4x8xf32>
    %149 = arith.cmpf olt, %148, %71 : vector<4x8xf32>
    %150 = arith.extui %149 : vector<4x8xi1> to vector<4x8xi32>
    %151 = arith.sitofp %150 : vector<4x8xi32> to vector<4x8xf32>
    %152 = arith.addf %140, %151 : vector<4x8xf32>
    %c6_i32 = arith.constant 6 : i32
    %153 = vector.broadcast %c6_i32 : i32 to vector<4x8xi32>
    %154 = arith.cmpi eq, %79, %153 : vector<4x8xi32>
    %155 = arith.extui %154 : vector<4x8xi1> to vector<4x8xi32>
    %156 = arith.sitofp %155 : vector<4x8xi32> to vector<4x8xf32>
    %157 = arith.mulf %71, %156 : vector<4x8xf32>
    %cst_68 = arith.constant dense<0.000000e+00> : vector<4xf32>
    %158 = vector.multi_reduction <add>, %157, %cst_68 [1] : vector<4x8xf32> to vector<4xf32>
    %159 = vector.shape_cast %158 : vector<4xf32> to vector<4x1xf32>
    %160 = vector.broadcast %159 : vector<4x1xf32> to vector<4x8xf32>
    %161 = arith.cmpf olt, %160, %71 : vector<4x8xf32>
    %162 = arith.extui %161 : vector<4x8xi1> to vector<4x8xi32>
    %163 = arith.sitofp %162 : vector<4x8xi32> to vector<4x8xf32>
    %164 = arith.addf %152, %163 : vector<4x8xf32>
    %c7_i32 = arith.constant 7 : i32
    %165 = vector.broadcast %c7_i32 : i32 to vector<4x8xi32>
    %166 = arith.cmpi eq, %79, %165 : vector<4x8xi32>
    %167 = arith.extui %166 : vector<4x8xi1> to vector<4x8xi32>
    %168 = arith.sitofp %167 : vector<4x8xi32> to vector<4x8xf32>
    %169 = arith.mulf %71, %168 : vector<4x8xf32>
    %cst_69 = arith.constant dense<0.000000e+00> : vector<4xf32>
    %170 = vector.multi_reduction <add>, %169, %cst_69 [1] : vector<4x8xf32> to vector<4xf32>
    %171 = vector.shape_cast %170 : vector<4xf32> to vector<4x1xf32>
    %172 = vector.broadcast %171 : vector<4x1xf32> to vector<4x8xf32>
    %173 = arith.cmpf olt, %172, %71 : vector<4x8xf32>
    %174 = arith.extui %173 : vector<4x8xi1> to vector<4x8xi32>
    %175 = arith.sitofp %174 : vector<4x8xi32> to vector<4x8xf32>
    %176 = arith.addf %164, %175 : vector<4x8xf32>
    %c8_i32_70 = arith.constant 8 : i32
    %cst_71 = arith.constant 5.500000e+00 : f32
    %177 = vector.broadcast %cst_71 : f32 to vector<4x8xf32>
    %178 = arith.cmpf ole, %176, %177 : vector<4x8xf32>
    %cst_72 = arith.constant -1.000000e+00 : f32
    %179 = vector.broadcast %cst_72 : f32 to vector<4x8xf32>
    %180 = arith.select %178, %71, %179 : vector<4x8xi1>, vector<4x8xf32>
    %cst_73 = arith.constant dense<0xFF800000> : vector<4xf32>
    %181 = vector.multi_reduction <maximumf>, %180, %cst_73 [1] : vector<4x8xf32> to vector<4xf32>
    %182 = vector.shape_cast %181 : vector<4xf32> to vector<4x1xf32>
    %cst_74 = arith.constant 6.500000e+00 : f32
    %183 = vector.broadcast %cst_74 : f32 to vector<4x8xf32>
    %184 = arith.cmpf ole, %176, %183 : vector<4x8xf32>
    %cst_75 = arith.constant -1.000000e+00 : f32
    %185 = vector.broadcast %cst_75 : f32 to vector<4x8xf32>
    %186 = arith.select %184, %71, %185 : vector<4x8xi1>, vector<4x8xf32>
    %cst_76 = arith.constant dense<0xFF800000> : vector<4xf32>
    %187 = vector.multi_reduction <maximumf>, %186, %cst_76 [1] : vector<4x8xf32> to vector<4xf32>
    %188 = vector.shape_cast %187 : vector<4xf32> to vector<4x1xf32>
    %189 = arith.subf %188, %182 : vector<4x1xf32>
    %cst_77 = arith.constant 6.000000e-01 : f32
    %190 = vector.broadcast %cst_77 : f32 to vector<4x1xf32>
    %191 = arith.mulf %190, %189 : vector<4x1xf32>
    %192 = arith.addf %182, %191 : vector<4x1xf32>
    %cst_78 = arith.constant 0.000000e+00 : f32
    %193 = vector.broadcast %cst_78 : f32 to vector<4x8xf32>
    %c0_i32_79 = arith.constant 0 : i32
    %194 = vector.broadcast %c0_i32_79 : i32 to vector<4x8xi32>
    %195 = arith.cmpi eq, %79, %194 : vector<4x8xi32>
    %196 = arith.extui %195 : vector<4x8xi1> to vector<4x8xi32>
    %197 = arith.sitofp %196 : vector<4x8xi32> to vector<4x8xf32>
    %198 = arith.mulf %78, %197 : vector<4x8xf32>
    %cst_80 = arith.constant dense<0.000000e+00> : vector<4xf32>
    %199 = vector.multi_reduction <add>, %198, %cst_80 [1] : vector<4x8xf32> to vector<4xf32>
    %200 = vector.shape_cast %199 : vector<4xf32> to vector<4x1xf32>
    %201 = vector.broadcast %200 : vector<4x1xf32> to vector<4x8xf32>
    %202 = arith.cmpf olt, %201, %78 : vector<4x8xf32>
    %203 = arith.extui %202 : vector<4x8xi1> to vector<4x8xi32>
    %204 = arith.sitofp %203 : vector<4x8xi32> to vector<4x8xf32>
    %205 = arith.addf %193, %204 : vector<4x8xf32>
    %c1_i32_81 = arith.constant 1 : i32
    %206 = vector.broadcast %c1_i32_81 : i32 to vector<4x8xi32>
    %207 = arith.cmpi eq, %79, %206 : vector<4x8xi32>
    %208 = arith.extui %207 : vector<4x8xi1> to vector<4x8xi32>
    %209 = arith.sitofp %208 : vector<4x8xi32> to vector<4x8xf32>
    %210 = arith.mulf %78, %209 : vector<4x8xf32>
    %cst_82 = arith.constant dense<0.000000e+00> : vector<4xf32>
    %211 = vector.multi_reduction <add>, %210, %cst_82 [1] : vector<4x8xf32> to vector<4xf32>
    %212 = vector.shape_cast %211 : vector<4xf32> to vector<4x1xf32>
    %213 = vector.broadcast %212 : vector<4x1xf32> to vector<4x8xf32>
    %214 = arith.cmpf olt, %213, %78 : vector<4x8xf32>
    %215 = arith.extui %214 : vector<4x8xi1> to vector<4x8xi32>
    %216 = arith.sitofp %215 : vector<4x8xi32> to vector<4x8xf32>
    %217 = arith.addf %205, %216 : vector<4x8xf32>
    %c2_i32_83 = arith.constant 2 : i32
    %218 = vector.broadcast %c2_i32_83 : i32 to vector<4x8xi32>
    %219 = arith.cmpi eq, %79, %218 : vector<4x8xi32>
    %220 = arith.extui %219 : vector<4x8xi1> to vector<4x8xi32>
    %221 = arith.sitofp %220 : vector<4x8xi32> to vector<4x8xf32>
    %222 = arith.mulf %78, %221 : vector<4x8xf32>
    %cst_84 = arith.constant dense<0.000000e+00> : vector<4xf32>
    %223 = vector.multi_reduction <add>, %222, %cst_84 [1] : vector<4x8xf32> to vector<4xf32>
    %224 = vector.shape_cast %223 : vector<4xf32> to vector<4x1xf32>
    %225 = vector.broadcast %224 : vector<4x1xf32> to vector<4x8xf32>
    %226 = arith.cmpf olt, %225, %78 : vector<4x8xf32>
    %227 = arith.extui %226 : vector<4x8xi1> to vector<4x8xi32>
    %228 = arith.sitofp %227 : vector<4x8xi32> to vector<4x8xf32>
    %229 = arith.addf %217, %228 : vector<4x8xf32>
    %c3_i32_85 = arith.constant 3 : i32
    %230 = vector.broadcast %c3_i32_85 : i32 to vector<4x8xi32>
    %231 = arith.cmpi eq, %79, %230 : vector<4x8xi32>
    %232 = arith.extui %231 : vector<4x8xi1> to vector<4x8xi32>
    %233 = arith.sitofp %232 : vector<4x8xi32> to vector<4x8xf32>
    %234 = arith.mulf %78, %233 : vector<4x8xf32>
    %cst_86 = arith.constant dense<0.000000e+00> : vector<4xf32>
    %235 = vector.multi_reduction <add>, %234, %cst_86 [1] : vector<4x8xf32> to vector<4xf32>
    %236 = vector.shape_cast %235 : vector<4xf32> to vector<4x1xf32>
    %237 = vector.broadcast %236 : vector<4x1xf32> to vector<4x8xf32>
    %238 = arith.cmpf olt, %237, %78 : vector<4x8xf32>
    %239 = arith.extui %238 : vector<4x8xi1> to vector<4x8xi32>
    %240 = arith.sitofp %239 : vector<4x8xi32> to vector<4x8xf32>
    %241 = arith.addf %229, %240 : vector<4x8xf32>
    %c4_i32_87 = arith.constant 4 : i32
    %242 = vector.broadcast %c4_i32_87 : i32 to vector<4x8xi32>
    %243 = arith.cmpi eq, %79, %242 : vector<4x8xi32>
    %244 = arith.extui %243 : vector<4x8xi1> to vector<4x8xi32>
    %245 = arith.sitofp %244 : vector<4x8xi32> to vector<4x8xf32>
    %246 = arith.mulf %78, %245 : vector<4x8xf32>
    %cst_88 = arith.constant dense<0.000000e+00> : vector<4xf32>
    %247 = vector.multi_reduction <add>, %246, %cst_88 [1] : vector<4x8xf32> to vector<4xf32>
    %248 = vector.shape_cast %247 : vector<4xf32> to vector<4x1xf32>
    %249 = vector.broadcast %248 : vector<4x1xf32> to vector<4x8xf32>
    %250 = arith.cmpf olt, %249, %78 : vector<4x8xf32>
    %251 = arith.extui %250 : vector<4x8xi1> to vector<4x8xi32>
    %252 = arith.sitofp %251 : vector<4x8xi32> to vector<4x8xf32>
    %253 = arith.addf %241, %252 : vector<4x8xf32>
    %c5_i32_89 = arith.constant 5 : i32
    %254 = vector.broadcast %c5_i32_89 : i32 to vector<4x8xi32>
    %255 = arith.cmpi eq, %79, %254 : vector<4x8xi32>
    %256 = arith.extui %255 : vector<4x8xi1> to vector<4x8xi32>
    %257 = arith.sitofp %256 : vector<4x8xi32> to vector<4x8xf32>
    %258 = arith.mulf %78, %257 : vector<4x8xf32>
    %cst_90 = arith.constant dense<0.000000e+00> : vector<4xf32>
    %259 = vector.multi_reduction <add>, %258, %cst_90 [1] : vector<4x8xf32> to vector<4xf32>
    %260 = vector.shape_cast %259 : vector<4xf32> to vector<4x1xf32>
    %261 = vector.broadcast %260 : vector<4x1xf32> to vector<4x8xf32>
    %262 = arith.cmpf olt, %261, %78 : vector<4x8xf32>
    %263 = arith.extui %262 : vector<4x8xi1> to vector<4x8xi32>
    %264 = arith.sitofp %263 : vector<4x8xi32> to vector<4x8xf32>
    %265 = arith.addf %253, %264 : vector<4x8xf32>
    %c6_i32_91 = arith.constant 6 : i32
    %266 = vector.broadcast %c6_i32_91 : i32 to vector<4x8xi32>
    %267 = arith.cmpi eq, %79, %266 : vector<4x8xi32>
    %268 = arith.extui %267 : vector<4x8xi1> to vector<4x8xi32>
    %269 = arith.sitofp %268 : vector<4x8xi32> to vector<4x8xf32>
    %270 = arith.mulf %78, %269 : vector<4x8xf32>
    %cst_92 = arith.constant dense<0.000000e+00> : vector<4xf32>
    %271 = vector.multi_reduction <add>, %270, %cst_92 [1] : vector<4x8xf32> to vector<4xf32>
    %272 = vector.shape_cast %271 : vector<4xf32> to vector<4x1xf32>
    %273 = vector.broadcast %272 : vector<4x1xf32> to vector<4x8xf32>
    %274 = arith.cmpf olt, %273, %78 : vector<4x8xf32>
    %275 = arith.extui %274 : vector<4x8xi1> to vector<4x8xi32>
    %276 = arith.sitofp %275 : vector<4x8xi32> to vector<4x8xf32>
    %277 = arith.addf %265, %276 : vector<4x8xf32>
    %c7_i32_93 = arith.constant 7 : i32
    %278 = vector.broadcast %c7_i32_93 : i32 to vector<4x8xi32>
    %279 = arith.cmpi eq, %79, %278 : vector<4x8xi32>
    %280 = arith.extui %279 : vector<4x8xi1> to vector<4x8xi32>
    %281 = arith.sitofp %280 : vector<4x8xi32> to vector<4x8xf32>
    %282 = arith.mulf %78, %281 : vector<4x8xf32>
    %cst_94 = arith.constant dense<0.000000e+00> : vector<4xf32>
    %283 = vector.multi_reduction <add>, %282, %cst_94 [1] : vector<4x8xf32> to vector<4xf32>
    %284 = vector.shape_cast %283 : vector<4xf32> to vector<4x1xf32>
    %285 = vector.broadcast %284 : vector<4x1xf32> to vector<4x8xf32>
    %286 = arith.cmpf olt, %285, %78 : vector<4x8xf32>
    %287 = arith.extui %286 : vector<4x8xi1> to vector<4x8xi32>
    %288 = arith.sitofp %287 : vector<4x8xi32> to vector<4x8xf32>
    %289 = arith.addf %277, %288 : vector<4x8xf32>
    %c8_i32_95 = arith.constant 8 : i32
    %cst_96 = arith.constant 5.500000e+00 : f32
    %290 = vector.broadcast %cst_96 : f32 to vector<4x8xf32>
    %291 = arith.cmpf ole, %289, %290 : vector<4x8xf32>
    %cst_97 = arith.constant -1.000000e+00 : f32
    %292 = vector.broadcast %cst_97 : f32 to vector<4x8xf32>
    %293 = arith.select %291, %78, %292 : vector<4x8xi1>, vector<4x8xf32>
    %cst_98 = arith.constant dense<0xFF800000> : vector<4xf32>
    %294 = vector.multi_reduction <maximumf>, %293, %cst_98 [1] : vector<4x8xf32> to vector<4xf32>
    %295 = vector.shape_cast %294 : vector<4xf32> to vector<4x1xf32>
    %cst_99 = arith.constant 6.500000e+00 : f32
    %296 = vector.broadcast %cst_99 : f32 to vector<4x8xf32>
    %297 = arith.cmpf ole, %289, %296 : vector<4x8xf32>
    %cst_100 = arith.constant -1.000000e+00 : f32
    %298 = vector.broadcast %cst_100 : f32 to vector<4x8xf32>
    %299 = arith.select %297, %78, %298 : vector<4x8xi1>, vector<4x8xf32>
    %cst_101 = arith.constant dense<0xFF800000> : vector<4xf32>
    %300 = vector.multi_reduction <maximumf>, %299, %cst_101 [1] : vector<4x8xf32> to vector<4xf32>
    %301 = vector.shape_cast %300 : vector<4xf32> to vector<4x1xf32>
    %302 = arith.subf %301, %295 : vector<4x1xf32>
    %cst_102 = arith.constant 6.000000e-01 : f32
    %303 = vector.broadcast %cst_102 : f32 to vector<4x1xf32>
    %304 = arith.mulf %303, %302 : vector<4x1xf32>
    %305 = arith.addf %295, %304 : vector<4x1xf32>
    %306 = vector.broadcast %192 : vector<4x1xf32> to vector<4x8xf32>
    %307 = arith.cmpf oge, %71, %306 : vector<4x8xf32>
    %cst_103 = arith.constant 0.000000e+00 : f32
    %308 = vector.broadcast %cst_103 : f32 to vector<4x8xf32>
    %309 = arith.select %307, %71, %308 : vector<4x8xi1>, vector<4x8xf32>
    %cst_104 = arith.constant dense<0.000000e+00> : vector<4xf32>
    %310 = vector.multi_reduction <add>, %309, %cst_104 [1] : vector<4x8xf32> to vector<4xf32>
    %311 = vector.shape_cast %310 : vector<4xf32> to vector<4x1xf32>
    %312 = vector.broadcast %305 : vector<4x1xf32> to vector<4x8xf32>
    %313 = arith.cmpf oge, %78, %312 : vector<4x8xf32>
    %cst_105 = arith.constant 0.000000e+00 : f32
    %314 = vector.broadcast %cst_105 : f32 to vector<4x8xf32>
    %315 = arith.select %313, %78, %314 : vector<4x8xi1>, vector<4x8xf32>
    %cst_106 = arith.constant dense<0.000000e+00> : vector<4xf32>
    %316 = vector.multi_reduction <add>, %315, %cst_106 [1] : vector<4x8xf32> to vector<4xf32>
    %317 = vector.shape_cast %316 : vector<4xf32> to vector<4x1xf32>
    %318 = arith.divf %311, %64 : vector<4x1xf32>
    %cst_107 = arith.constant 1.000000e+00 : f32
    %319 = vector.broadcast %cst_107 : f32 to vector<4x1xf32>
    %320 = arith.addf %319, %318 : vector<4x1xf32>
    %321 = math.log %320 : vector<4x1xf32>
    %322 = arith.divf %317, %64 : vector<4x1xf32>
    %cst_108 = arith.constant 1.000000e+00 : f32
    %323 = vector.broadcast %cst_108 : f32 to vector<4x1xf32>
    %324 = arith.addf %323, %322 : vector<4x1xf32>
    %325 = math.log %324 : vector<4x1xf32>
    %326 = arith.addf %321, %325 : vector<4x1xf32>
    %327 = vector.shape_cast %326 : vector<4x1xf32> to vector<1x4x1xf32>
    %cst_109 = arith.constant dense<0.000000e+00> : vector<1xf32>
    %328 = vector.multi_reduction <add>, %327, %cst_109 [1, 2] : vector<1x4x1xf32> to vector<1xf32>
    %329 = vector.shape_cast %328 : vector<1xf32> to vector<1x1x1xf32>
    %330 = vector.extract %329[0, 0, 0] : f32 from vector<1x1x1xf32>
    %331 = vector.broadcast %330 : f32 to vector<1x1xf32>
    %cst_110 = arith.constant 8.000000e+00 : f32
    %332 = vector.broadcast %cst_110 : f32 to vector<1x1xf32>
    %333 = arith.divf %331, %332 : vector<1x1xf32>
    %c0_111 = arith.constant 0 : index
    %c0_112 = arith.constant 0 : index
    %334 = vector.load %arg16[%c0_111, %c0_112] : memref<1x1xf32, #tpu.memory_space<vmem>>, vector<1x1xf32>
    tpu.vector_store %arg16[%c0_111, %c0_112], %333 {strides = array<i32>} : memref<1x1xf32, #tpu.memory_space<vmem>>, vector<1x1xf32>,
    return
  }
  func.func @transform_0(%arg0: i32, %arg1: memref<8xi32, #tpu.memory_space<smem>>, %arg2: memref<8xi32, #tpu.memory_space<smem>>, %arg3: memref<8xi32, #tpu.memory_space<smem>>, %arg4: memref<8xi32, #tpu.memory_space<smem>>, %arg5: memref<4xi32, #tpu.memory_space<smem>>, %arg6: memref<4xi32, #tpu.memory_space<smem>>) -> (i32, i32) {
    %c0_i32 = arith.constant 0 : i32
    %c0_i32_0 = arith.constant 0 : i32
    %c0_i32_1 = arith.constant 0 : i32
    return %c0_i32, %c0_i32_0 : i32, i32
  }
  func.func @transform_1(%arg0: i32, %arg1: memref<8xi32, #tpu.memory_space<smem>>, %arg2: memref<8xi32, #tpu.memory_space<smem>>, %arg3: memref<8xi32, #tpu.memory_space<smem>>, %arg4: memref<8xi32, #tpu.memory_space<smem>>, %arg5: memref<4xi32, #tpu.memory_space<smem>>, %arg6: memref<4xi32, #tpu.memory_space<smem>>) -> (i32, i32) {
    %c0_i32 = arith.constant 0 : i32
    %c0_i32_0 = arith.constant 0 : i32
    %c0_i32_1 = arith.constant 0 : i32
    return %c0_i32, %c0_i32_0 : i32, i32
  }
  func.func @transform_2(%arg0: i32, %arg1: memref<8xi32, #tpu.memory_space<smem>>, %arg2: memref<8xi32, #tpu.memory_space<smem>>, %arg3: memref<8xi32, #tpu.memory_space<smem>>, %arg4: memref<8xi32, #tpu.memory_space<smem>>, %arg5: memref<4xi32, #tpu.memory_space<smem>>, %arg6: memref<4xi32, #tpu.memory_space<smem>>) -> (i32, i32) {
    %c0_i32 = arith.constant 0 : i32
    %c0_i32_0 = arith.constant 0 : i32
    %c0_i32_1 = arith.constant 0 : i32
    return %c0_i32, %c0_i32_0 : i32, i32
  }
  func.func @transform_3(%arg0: i32, %arg1: memref<8xi32, #tpu.memory_space<smem>>, %arg2: memref<8xi32, #tpu.memory_space<smem>>, %arg3: memref<8xi32, #tpu.memory_space<smem>>, %arg4: memref<8xi32, #tpu.memory_space<smem>>, %arg5: memref<4xi32, #tpu.memory_space<smem>>, %arg6: memref<4xi32, #tpu.memory_space<smem>>) -> (i32, i32) {
    %c0_i32 = arith.constant 0 : i32
    %c0_i32_0 = arith.constant 0 : i32
    %c0_i32_1 = arith.constant 0 : i32
    return %c0_i32, %c0_i32_0 : i32, i32
  }
  func.func @transform_4(%arg0: i32, %arg1: memref<8xi32, #tpu.memory_space<smem>>, %arg2: memref<8xi32, #tpu.memory_space<smem>>, %arg3: memref<8xi32, #tpu.memory_space<smem>>, %arg4: memref<8xi32, #tpu.memory_space<smem>>, %arg5: memref<4xi32, #tpu.memory_space<smem>>, %arg6: memref<4xi32, #tpu.memory_space<smem>>) -> (i32, i32) {
    %c0_i32 = arith.constant 0 : i32
    %c0_i32_0 = arith.constant 0 : i32
    %c0_i32_1 = arith.constant 0 : i32
    return %c0_i32, %c0_i32_0 : i32, i32
  }
  func.func @transform_5(%arg0: i32, %arg1: memref<8xi32, #tpu.memory_space<smem>>, %arg2: memref<8xi32, #tpu.memory_space<smem>>, %arg3: memref<8xi32, #tpu.memory_space<smem>>, %arg4: memref<8xi32, #tpu.memory_space<smem>>, %arg5: memref<4xi32, #tpu.memory_space<smem>>, %arg6: memref<4xi32, #tpu.memory_space<smem>>) -> (i32, i32) {
    %c0_i32 = arith.constant 0 : i32
    %c0_i32_0 = arith.constant 0 : i32
    %c0_i32_1 = arith.constant 0 : i32
    return %c0_i32, %c0_i32_0 : i32, i32
  }
  func.func @transform_6(%arg0: i32, %arg1: memref<8xi32, #tpu.memory_space<smem>>, %arg2: memref<8xi32, #tpu.memory_space<smem>>, %arg3: memref<8xi32, #tpu.memory_space<smem>>, %arg4: memref<8xi32, #tpu.memory_space<smem>>, %arg5: memref<4xi32, #tpu.memory_space<smem>>, %arg6: memref<4xi32, #tpu.memory_space<smem>>) -> (i32, i32) {
    %c0_i32 = arith.constant 0 : i32
    %c0_i32_0 = arith.constant 0 : i32
    %c0_i32_1 = arith.constant 0 : i32
    return %c0_i32, %c0_i32_0 : i32, i32
  }
  func.func @transform_7(%arg0: i32, %arg1: memref<8xi32, #tpu.memory_space<smem>>, %arg2: memref<8xi32, #tpu.memory_space<smem>>, %arg3: memref<8xi32, #tpu.memory_space<smem>>, %arg4: memref<8xi32, #tpu.memory_space<smem>>, %arg5: memref<4xi32, #tpu.memory_space<smem>>, %arg6: memref<4xi32, #tpu.memory_space<smem>>) -> (i32, i32) {
    %c0_i32 = arith.constant 0 : i32
    %c0_i32_0 = arith.constant 0 : i32
    %c0_i32_1 = arith.constant 0 : i32
    return %c0_i32, %c0_i32_0 : i32, i32
  }
  func.func @transform_8(%arg0: i32, %arg1: memref<8xi32, #tpu.memory_space<smem>>, %arg2: memref<8xi32, #tpu.memory_space<smem>>, %arg3: memref<8xi32, #tpu.memory_space<smem>>, %arg4: memref<8xi32, #tpu.memory_space<smem>>, %arg5: memref<4xi32, #tpu.memory_space<smem>>, %arg6: memref<4xi32, #tpu.memory_space<smem>>) -> (i32, i32) {
    %c0_i32 = arith.constant 0 : i32
    %c0_i32_0 = arith.constant 0 : i32
    %c0_i32_1 = arith.constant 0 : i32
    return %c0_i32, %c0_i32_0 : i32, i32
  }
  func.func @transform_9(%arg0: i32, %arg1: memref<8xi32, #tpu.memory_space<smem>>, %arg2: memref<8xi32, #tpu.memory_space<smem>>, %arg3: memref<8xi32, #tpu.memory_space<smem>>, %arg4: memref<8xi32, #tpu.memory_space<smem>>, %arg5: memref<4xi32, #tpu.memory_space<smem>>, %arg6: memref<4xi32, #tpu.memory_space<smem>>) -> (i32, i32) {
    %c0_i32 = arith.constant 0 : i32
    %c0_i32_0 = arith.constant 0 : i32
    %c0_i32_1 = arith.constant 0 : i32
    return %c0_i32, %c0_i32_0 : i32, i32
  }
}

</mosaic_0001>

<llo_original>
// kernel: tpu_custom_call.1
$region0: #{tpu_custom_call.1}
  #allocation0 [shape = 'u32[]', space=smem, size = 0x4, offset = 0x4, fixed_abs, tag = 'smem constant byte address 0x4 - core index']
  #allocation1 [shape = 'u32[72,128]{1,0:T(1,128)}', space=vmem, size = 0x9000, scoped, tag = 'internal scratch']
  #allocation2 [shape = 'f32[4,128]{1,0:T(4,128)}', space=vmem, size = 0x800, scoped, tag = 'scratch operand']
  #allocation3 [shape = 'f32[4,128]{1,0:T(4,128)}', space=vmem, size = 0x800, scoped, tag = 'scratch operand']
  #allocation4 [shape = 'f32[4,8]{1,0:T(4,128)}', space=vmem, size = 0x800, scoped, tag = 'scratch operand']
  #allocation5 [shape = 'f32[4,8]{1,0:T(4,128)}', space=vmem, size = 0x800, scoped, tag = 'scratch operand']
  #allocation6 [shape = 'f32[4,8]{1,0:T(4,128)}', space=vmem, size = 0x800, scoped, tag = 'scratch operand']
  #allocation7 [shape = 'f32[4,8]{1,0:T(4,128)}', space=vmem, size = 0x800, scoped, tag = 'scratch operand']
  #allocation8 [shape = 's32[1]{0}', space=sflag, size = 0x4, scoped, tag = 'scoped memory for tpu_custom_call.1']
  #allocation9 [shape = 'u8[512]{0}', space=smem, size = 0x200, scoped, tag = 'prefetched SMEM operand 0']
  #allocation10 [shape = 'u8[512]{0}', space=smem, size = 0x200, scoped, tag = 'prefetched SMEM operand 1']
  #allocation11 [shape = 'u8[512]{0}', space=smem, size = 0x200, scoped, tag = 'prefetched SMEM operand 2']
  #allocation12 [shape = 'u8[512]{0}', space=smem, size = 0x200, scoped, tag = 'prefetched SMEM operand 3']
  #allocation13 [shape = 'u8[512]{0}', space=smem, size = 0x200, scoped, tag = 'prefetched SMEM operand 4']
  #allocation14 [shape = 'u8[512]{0}', space=smem, size = 0x200, scoped, tag = 'prefetched SMEM operand 5']
  %s0 = inlined_call_operand.hbm [shape: s32[8], index: 0, kind: input, shape index: {}]
  %s1 = inlined_call_operand.hbm [shape: s32[8], index: 1, kind: input, shape index: {}]
  %s2 = inlined_call_operand.hbm [shape: s32[8], index: 2, kind: input, shape index: {}]
  %s3 = inlined_call_operand.hbm [shape: s32[8], index: 3, kind: input, shape index: {}]
  %s4 = inlined_call_operand.hbm [shape: s32[4], index: 4, kind: input, shape index: {}]
  %s5 = inlined_call_operand.hbm [shape: s32[4], index: 5, kind: input, shape index: {}]
  %s6 = inlined_call_operand.hbm [shape: f32[8,128], index: 6, kind: input, shape index: {}]
  %s7 = inlined_call_operand.vmem [shape: f32[4,8], index: 7, kind: input, shape index: {}]
  %s8 = inlined_call_operand.hbm [shape: f32[4,8], index: 8, kind: input, shape index: {}]
  %s9 = inlined_call_operand.vmem [shape: f32[4,8], index: 9, kind: input, shape index: {}]
  %s10 = inlined_call_operand.hbm [shape: f32[4,8], index: 10, kind: input, shape index: {}]
  %s11 = inlined_call_operand.hbm [shape: f32[4,8], index: 11, kind: input, shape index: {}]
  %s12 = inlined_call_operand.hbm [shape: f32[8,128], index: 12, kind: output, shape index: {0}]
  %s13 = inlined_call_operand.hbm [shape: f32[8,128], index: 13, kind: output, shape index: {1}]
  %s14 = inlined_call_operand.hbm [shape: f32[8,8], index: 14, kind: output, shape index: {2}]
  %s15 = inlined_call_operand.hbm [shape: f32[1,1], index: 15, kind: output, shape index: {3}]
  %16 = xla_tuple %s12, %s13, %s14, %s15
  %s17 = sld [smem:[#allocation0]]
  $region95: #{tpu_custom_call.1} parent=0
    _
  %s19 = ssub.s32 1, %s17
  %s20 = scalar_select 0, %s19, %s17
  %s22 = sshll.u32 %s0, 4
  %s23 = int_to_ptr.hbm [resolvable:$true] %s22
  %25 = dma.hbm_to_smem %s23, 16, [#allocation9], [#allocation8]
  %s27 = sshll.u32 %s1, 4
  %s28 = int_to_ptr.hbm [resolvable:$true] %s27
  %30 = dma.hbm_to_smem %s28, 16, [#allocation10], [#allocation8]
  %s32 = sshll.u32 %s2, 4
  %s33 = int_to_ptr.hbm [resolvable:$true] %s32
  %35 = dma.hbm_to_smem %s33, 16, [#allocation11], [#allocation8]
  %s37 = sshll.u32 %s3, 4
  %s38 = int_to_ptr.hbm [resolvable:$true] %s37
  %40 = dma.hbm_to_smem %s38, 16, [#allocation12], [#allocation8]
  %s42 = sshll.u32 %s4, 4
  %s43 = int_to_ptr.hbm [resolvable:$true] %s42
  %45 = dma.hbm_to_smem %s43, 16, [#allocation13], [#allocation8]
  %s47 = sshll.u32 %s5, 4
  %s48 = int_to_ptr.hbm [resolvable:$true] %s47
  %50 = dma.hbm_to_smem %s48, 16, [#allocation14], [#allocation8]
  %52 = dma.done [#allocation8], 96
  %53 = sfence
  $region1: #{tpu_custom_call.1} parent=0
    #allocation15 [shape = 'u8[4096]{0}', space=vmem, size = 0x1000, scoped, tag = 'input window, operand 6, single buffered']
    #allocation16 [shape = 's32[1]{0}', space=sflag, size = 0x4, scoped, tag = 'scoped memory for tpu_custom_call.1']
    #allocation17 [shape = 's32[1]{0}', space=sflag, size = 0x4, scoped, tag = 'scoped memory for tpu_custom_call.1']
    #allocation18 [shape = 'u8[2048]{0}', space=vmem, size = 0x800, scoped, tag = 'input window, operand 8, single buffered']
    #allocation19 [shape = 's32[1]{0}', space=sflag, size = 0x4, scoped, tag = 'scoped memory for tpu_custom_call.1']
    #allocation20 [shape = 'u8[2048]{0}', space=vmem, size = 0x800, scoped, tag = 'input window, operand 10, single buffered']
    #allocation21 [shape = 'u8[2048]{0}', space=vmem, size = 0x800, scoped, tag = 'input window, operand 11, single buffered']
    #allocation22 [shape = 's32[1]{0}', space=sflag, size = 0x4, scoped, tag = 'scoped memory for tpu_custom_call.1']
    #allocation23 [shape = 'u8[4096]{0}', space=vmem, size = 0x1000, scoped, tag = 'output window, operand 0, single buffered']
    #allocation24 [shape = 'u8[4096]{0}', space=vmem, size = 0x1000, scoped, tag = 'output window, operand 1, single buffered']
    #allocation25 [shape = 's32[1]{0}', space=sflag, size = 0x4, scoped, tag = 'scoped memory for tpu_custom_call.1']
    #allocation26 [shape = 'u8[4096]{0}', space=vmem, size = 0x1000, scoped, tag = 'output window, operand 2, single buffered']
    #allocation27 [shape = 'u8[512]{0}', space=vmem, size = 0x400, scoped, tag = 'output window, operand 3, single buffered']
    #allocation28 [shape = 's32[1]{0}', space=sflag, size = 0x4, scoped, tag = 'scoped memory for tpu_custom_call.1']
    %54 = vsyncpa [#allocation16], 0
    %55 = vsyncpa [#allocation19], 0
    %56 = vsyncpa [#allocation22], 0
    %57 = vsyncpa [#allocation17], 0
    %58 = vsyncpa [#allocation25], 0
    %59 = vsyncpa [#allocation28], 0
    // Predicated region
    $region2: #{tpu_custom_call.1} parent=1 // pred_check
      _
    $region3: #{tpu_custom_call.1} parent=1 // pred_check_branch
      %61 = sbr.rel (0) target = $region5
    $region4: #{tpu_custom_call.1} parent=1 // pred_region
      %63 = vsyncadd [#allocation16], 0
      %s65 = sshll.u32 %s6, 4
      %s66 = int_to_ptr.hbm [resolvable:$true] %s65
      %s67 = sshll.u32 [#allocation15], 4
      %s68 = int_to_ptr.vmem [resolvable:$true] %s67
      %70 = dma.hbm_to_vmem [thread:$0]  %s66, 128, %s68, [#allocation16]
    $region5: #{tpu_custom_call.1} parent=1 // pred_fallthru
      _
    // Predicated region
    $region6: #{tpu_custom_call.1} parent=1 // pred_check
      _
    $region7: #{tpu_custom_call.1} parent=1 // pred_check_branch
      %72 = sbr.rel (0) target = $region9
    $region8: #{tpu_custom_call.1} parent=1 // pred_region
      _
    $region9: #{tpu_custom_call.1} parent=1 // pred_fallthru
      _
    // Predicated region
    $region10: #{tpu_custom_call.1} parent=1 // pred_check
      _
    $region11: #{tpu_custom_call.1} parent=1 // pred_check_branch
      %74 = sbr.rel (0) target = $region13
    $region12: #{tpu_custom_call.1} parent=1 // pred_region
      %76 = vsyncadd [#allocation19], 0
      %s78 = sshll.u32 %s8, 4
      %s79 = int_to_ptr.hbm [resolvable:$true] %s78
      %s80 = sshll.u32 [#allocation18], 4
      %s81 = int_to_ptr.vmem [resolvable:$true] %s80
      %83 = dma.hbm_to_vmem [thread:$0]  %s79, 64, %s81, [#allocation19]
    $region13: #{tpu_custom_call.1} parent=1 // pred_fallthru
      _
    // Predicated region
    $region14: #{tpu_custom_call.1} parent=1 // pred_check
      _
    $region15: #{tpu_custom_call.1} parent=1 // pred_check_branch
      %85 = sbr.rel (0) target = $region17
    $region16: #{tpu_custom_call.1} parent=1 // pred_region
      _
    $region17: #{tpu_custom_call.1} parent=1 // pred_fallthru
      _
    // Predicated region
    $region18: #{tpu_custom_call.1} parent=1 // pred_check
      _
    $region19: #{tpu_custom_call.1} parent=1 // pred_check_branch
      %87 = sbr.rel (0) target = $region21
    $region20: #{tpu_custom_call.1} parent=1 // pred_region
      %89 = vsyncadd [#allocation19], 0
      %s91 = sshll.u32 %s10, 4
      %s92 = int_to_ptr.hbm [resolvable:$true] %s91
      %s93 = sshll.u32 [#allocation20], 4
      %s94 = int_to_ptr.vmem [resolvable:$true] %s93
      %96 = dma.hbm_to_vmem [thread:$0]  %s92, 64, %s94, [#allocation19]
    $region21: #{tpu_custom_call.1} parent=1 // pred_fallthru
      _
    // Predicated region
    $region22: #{tpu_custom_call.1} parent=1 // pred_check
      _
    $region23: #{tpu_custom_call.1} parent=1 // pred_check_branch
      %98 = sbr.rel (0) target = $region25
    $region24: #{tpu_custom_call.1} parent=1 // pred_region
      %100 = vsyncadd [#allocation22], 0
      %s102 = sshll.u32 %s11, 4
      %s103 = int_to_ptr.hbm [resolvable:$true] %s102
      %s104 = sshll.u32 [#allocation21], 4
      %s105 = int_to_ptr.vmem [resolvable:$true] %s104
      %107 = dma.hbm_to_vmem [thread:$0]  %s103, 64, %s105, [#allocation22]
    $region25: #{tpu_custom_call.1} parent=1 // pred_fallthru
      _
    // Predicated region
    $region26: #{tpu_custom_call.1} parent=1 // pred_check
      _
    $region27: #{tpu_custom_call.1} parent=1 // pred_check_branch
      %109 = sbr.rel (0) target = $region29
    $region28: #{tpu_custom_call.1} parent=1 // pred_region
      %111 = dma.done [#allocation16], 128
    $region29: #{tpu_custom_call.1} parent=1 // pred_fallthru
      _
    // Predicated region
    $region30: #{tpu_custom_call.1} parent=1 // pred_check
      _
    $region31: #{tpu_custom_call.1} parent=1 // pred_check_branch
      %113 = sbr.rel (0) target = $region33
    $region32: #{tpu_custom_call.1} parent=1 // pred_region
      %115 = dma.done [#allocation19], 64
    $region33: #{tpu_custom_call.1} parent=1 // pred_fallthru
      _
    // Predicated region
    $region34: #{tpu_custom_call.1} parent=1 // pred_check
      _
    $region35: #{tpu_custom_call.1} parent=1 // pred_check_branch
      %117 = sbr.rel (0) target = $region37
    $region36: #{tpu_custom_call.1} parent=1 // pred_region
      %119 = dma.done [#allocation19], 64
    $region37: #{tpu_custom_call.1} parent=1 // pred_fallthru
      _
    // Predicated region
    $region38: #{tpu_custom_call.1} parent=1 // pred_check
      _
    $region39: #{tpu_custom_call.1} parent=1 // pred_check_branch
      %121 = sbr.rel (0) target = $region41
    $region40: #{tpu_custom_call.1} parent=1 // pred_region
      %123 = dma.done [#allocation22], 64
    $region41: #{tpu_custom_call.1} parent=1 // pred_fallthru
      _
    loop: start=0, step=1, limit=8
    $region42: #{tpu_custom_call.1} parent=1 // loop_pre_header
      _
    $region43: #{tpu_custom_call.1} parent=1 // loop_header
      %s125 = sphi 0, %s129
      %p126 = scmp.ge.s32.totalorder %s125, 8
    $region44: #{tpu_custom_call.1} parent=1 // loop_header_branch
      %128 = sbr.rel (%p126) target = $region48
    $region45: #{tpu_custom_call.1} parent=1 // loop_body
      %s130 = scalar_lea.vmem [#allocation15], %s125
      %v131 = vld [vmem:[%s130] sm:$0x1]
      %s132 = sld [smem:[#allocation9 + %s125]]
      %s133 = sld [smem:[#allocation11 + %s125]]
      %s134 = scalar_lea.vmem [#allocation15], %s132
      %v135 = vld [vmem:[%s134] sm:$0x1]
      %s136 = scalar_lea.vmem [#allocation15], %s133
      %v137 = vld [vmem:[%s136] sm:$0x1]
      %s138 = sld [smem:[#allocation10 + %s125]]
      %s139 = scvt.s32.f32 %s138
      %s140 = sld [smem:[#allocation12 + %s125]]
      %s141 = scvt.s32.f32 %s140
      %v142 = vmul.f32 %v131, 1.5
      %v143 = vmul.f32 %v135, 0.5
      %v144 = vsub.f32 %v142, %v143
      %v145 = vstv %s139
      %v146 = vmul.f32 %v145, %v144
      %s147 = scalar_lea.vmem [#allocation23], %s125
      %148 = vst [vmem:[%s147] sm:$0x1] %v146
      %v149 = vmul.f32 %v131, 0.5
      %v150 = vmul.f32 %v137, 0.5
      %v151 = vadd.f32 %v149, %v150
      %v152 = vstv %s141
      %v153 = vmul.f32 %v152, %v151
      %s154 = scalar_lea.vmem [#allocation24], %s125
      %155 = vst [vmem:[%s154] sm:$0x1] %v153
    $region46: #{tpu_custom_call.1} parent=1 // loop_footer
      %s129 = sadd.s32 1, %s125
    $region47: #{tpu_custom_call.1} parent=1 // loop_footer_branch
      %124 = sbr.rel target = $region43
    $region48: #{tpu_custom_call.1} parent=1 // loop_exit
      _
    %v156 = vld [vmem:[#allocation15] sm:$0xff]
    %v157 = vld [vmem:[#allocation24] sm:$0xff]
    %v158 = vmul.f32 %v157, %v157
    %159 = vadd.xlane.f32.xlu0 %v158
    %v160 = vpop.xlane.xlu0 %159
    %v161 = vmax.f32 %v160, 1e-16
    %v162 = vrsqrt.pop %v161
    %v163 = vmul.f32 %v162, %v161
    %v164 = vmul.f32 %v163, %v162
    %v165 = vmul.f32 0.5, %v164
    %v166 = vsub.f32 1.5, %v165
    %v167 = vmul.f32 %v162, %v166
    %v168 = vmul.f32 %v161, %v167
    %vm169 = vcmp.eq.f32.partialorder %v161, inf
    %v170 = vsel %vm169, %v161, %v168
    %vm171 = vcmp.eq.f32.partialorder %v161, 0.0
    %v172 = vand.u32 %v161, 2147483648
    %v173 = vsel %vm171, %v172, %v170
    %v174 = vrcp.pop %v173
    %v175 = vmul.f32 %v173, %v174
    %v176 = vsub.f32 1.0, %v175
    %v177 = vmul.f32 %v174, %v176
    %v178 = vadd.f32 %v174, %v177
    %vm179 = vweird.f32 %v173
    %vm180 = vweird.f32 %v174
    %vm181 = vmor %vm179, %vm180
    %v182 = vsel %vm181, %v174, %v178
    %v183 = vand.u32 2147483647, %v173
    %vm184 = vcmp.eq.f32.partialorder %v183, 8.507059e+37
    %v185 = vand.u32 %v173, 2147483648
    %v186 = vor.u32 1.1754944e-38, %v185
    %v187 = vsel %vm184, %v186, %v182
    %v188 = vmul.f32 %v157, %v187
    %v189 = vld [vmem:[#allocation23] sm:$0xff]
    %v190 = vmul.f32 %v189, %v189
    %191 = vadd.xlane.f32.xlu0 %v190
    %v192 = vpop.xlane.xlu0 %191
    %v193 = vmax.f32 %v192, 1e-16
    %v194 = vrsqrt.pop %v193
    %v195 = vmul.f32 %v194, %v193
    %v196 = vmul.f32 %v195, %v194
    %v197 = vmul.f32 0.5, %v196
    %v198 = vsub.f32 1.5, %v197
    %v199 = vmul.f32 %v194, %v198
    %v200 = vmul.f32 %v193, %v199
    %vm201 = vcmp.eq.f32.partialorder %v193, inf
    %v202 = vsel %vm201, %v193, %v200
    %vm203 = vcmp.eq.f32.partialorder %v193, 0.0
    %v204 = vand.u32 %v193, 2147483648
    %v205 = vsel %vm203, %v204, %v202
    %v206 = vrcp.pop %v205
    %v207 = vmul.f32 %v205, %v206
    %v208 = vsub.f32 1.0, %v207
    %v209 = vmul.f32 %v206, %v208
    %v210 = vadd.f32 %v206, %v209
    %vm211 = vweird.f32 %v205
    %vm212 = vweird.f32 %v206
    %vm213 = vmor %vm211, %vm212
    %v214 = vsel %vm213, %v206, %v210
    %v215 = vand.u32 2147483647, %v205
    %vm216 = vcmp.eq.f32.partialorder %v215, 8.507059e+37
    %v217 = vand.u32 %v205, 2147483648
    %v218 = vor.u32 1.1754944e-38, %v217
    %v219 = vsel %vm216, %v218, %v214
    %v220 = vmul.f32 %v189, %v219
    %v221 = vmul.f32 %v156, %v156
    %222 = vadd.xlane.f32.xlu0 %v221
    %v223 = vpop.xlane.xlu0 %222
    %v224 = vmax.f32 %v223, 1e-16
    %v225 = vrcp.pop %v224
    %v226 = vmul.f32 %v224, %v225
    %v227 = vsub.f32 1.0, %v226
    %v228 = vmul.f32 %v225, %v227
    %v229 = vadd.f32 %v225, %v228
    %vm230 = vweird.f32 %v224
    %vm231 = vweird.f32 %v225
    %vm232 = vmor %vm230, %vm231
    %v233 = vsel %vm232, %v225, %v229
    %v234 = vand.u32 2147483647, %v224
    %vm235 = vcmp.eq.f32.partialorder %v234, 8.507059e+37
    %v236 = vand.u32 %v224, 2147483648
    %v237 = vor.u32 1.1754944e-38, %v236
    %v238 = vsel %vm235, %v237, %v233
    %v239 = vmul.f32 %v223, %v238
    %240 = vmatpush.xpose.msra.mxu0 0.0
    %241 = vmatpush.xpose.msra.mxu0 0.0
    %242 = vmatpush.xpose.msra.mxu0 0.0
    %243 = vmatpush.xpose.msra.mxu0 0.0
    %244 = vmatpush.xpose.msra.mxu0 0.0
    %245 = vmatpush.xpose.msra.mxu0 0.0
    %246 = vmatpush.xpose.msra.mxu0 0.0
    %247 = vmatpush.xpose.msra.mxu0 0.0
    %248 = vmatpush.xpose.msra.mxu0 0.0
    %249 = vmatpush.xpose.msra.mxu0 0.0
    %250 = vmatpush.xpose.msra.mxu0 0.0
    %251 = vmatpush.xpose.msra.mxu0 0.0
    %252 = vmatpush.xpose.msra.mxu0 0.0
    %253 = vmatpush.xpose.msra.mxu0 0.0
    %254 = vmatpush.xpose.msra.mxu0 0.0
    %255 = vmatpush.xpose.msra.mxu0 %v188
    %256 = vmatmul.f32.gmra.mxu0 %v188
    %v257 = vpop.f32.mrf.mxu0
    %v258 = vadd.f32 0.0, %v257
    %259 = vdwg.mxu0
    %v260 = vlaneseq
    %v261 = vshrl.u32 %v260, 7
    %v262 = vlaneseq
    %v263 = vand.u32 %v262, 127
    %vm264 = vcmp.eq.s32.totalorder %v261, %v263
    %v265 = vsel %vm264, %v239, %v258
    %vm266 = vcmask 64512
    %267 = vst.msk [vmem:[#allocation26] sm:$0xff] %vm266, %v265
    loop: start=0, step=1, limit=4
    $region49: #{tpu_custom_call.1} parent=1 // loop_pre_header
      _
    $region50: #{tpu_custom_call.1} parent=1 // loop_header
      %s269 = sphi 0, %s273
      %p270 = scmp.ge.s32.totalorder %s269, 4
    $region51: #{tpu_custom_call.1} parent=1 // loop_header_branch
      %272 = sbr.rel (%p270) target = $region55
    $region52: #{tpu_custom_call.1} parent=1 // loop_body
      %s274 = sld [smem:[#allocation13 + %s269]]
      %s275 = sld [smem:[#allocation14 + %s269]]
      %s276 = scalar_lea.vmem [#allocation23], %s274
      %v277 = vld [vmem:[%s276] sm:$0x1]
      %s278 = scalar_lea.vmem [#allocation23], %s275
      %v279 = vld [vmem:[%s278] sm:$0x1]
      %v280 = vmul.f32 %v277, %v277
      %vm281 = vcmask 1040384
      %v282 = vsel %vm281, %v280, 0.0
      %283 = vadd.xlane.f32.xlu0 %v282
      %v284 = vpop.xlane.xlu0 %283
      %v285 = vmax.f32 %v284, 1e-16
      %v286 = vrsqrt.pop %v285
      %v287 = vmul.f32 %v286, %v285
      %v288 = vmul.f32 %v287, %v286
      %v289 = vmul.f32 0.5, %v288
      %v290 = vsub.f32 1.5, %v289
      %v291 = vmul.f32 %v286, %v290
      %v292 = vmul.f32 %v285, %v291
      %vm293 = vcmp.eq.f32.partialorder %v285, inf
      %v294 = vsel %vm293, %v285, %v292
      %vm295 = vcmp.eq.f32.partialorder %v285, 0.0
      %v296 = vand.u32 %v285, 2147483648
      %v297 = vsel %vm295, %v296, %v294
      %v298 = vrcp.pop %v297
      %v299 = vmul.f32 %v297, %v298
      %v300 = vsub.f32 1.0, %v299
      %v301 = vmul.f32 %v298, %v300
      %v302 = vadd.f32 %v298, %v301
      %vm303 = vweird.f32 %v297
      %vm304 = vweird.f32 %v298
      %vm305 = vmor %vm303, %vm304
      %v306 = vsel %vm305, %v298, %v302
      %v307 = vand.u32 2147483647, %v297
      %vm308 = vcmp.eq.f32.partialorder %v307, 8.507059e+37
      %v309 = vand.u32 %v297, 2147483648
      %v310 = vor.u32 1.1754944e-38, %v309
      %v311 = vsel %vm308, %v310, %v306
      %v312 = vmul.f32 %v277, %v311
      %v313 = vmul.f32 %v279, %v279
      %v314 = vsel %vm281, %v313, 0.0
      %315 = vadd.xlane.f32.xlu0 %v314
      %v316 = vpop.xlane.xlu0 %315
      %v317 = vmax.f32 %v316, 1e-16
      %v318 = vrsqrt.pop %v317
      %v319 = vmul.f32 %v318, %v317
      %v320 = vmul.f32 %v319, %v318
      %v321 = vmul.f32 0.5, %v320
      %v322 = vsub.f32 1.5, %v321
      %v323 = vmul.f32 %v318, %v322
      %v324 = vmul.f32 %v317, %v323
      %vm325 = vcmp.eq.f32.partialorder %v317, inf
      %v326 = vsel %vm325, %v317, %v324
      %vm327 = vcmp.eq.f32.partialorder %v317, 0.0
      %v328 = vand.u32 %v317, 2147483648
      %v329 = vsel %vm327, %v328, %v326
      %v330 = vrcp.pop %v329
      %v331 = vmul.f32 %v329, %v330
      %v332 = vsub.f32 1.0, %v331
      %v333 = vmul.f32 %v330, %v332
      %v334 = vadd.f32 %v330, %v333
      %vm335 = vweird.f32 %v329
      %vm336 = vweird.f32 %v330
      %vm337 = vmor %vm335, %vm336
      %v338 = vsel %vm337, %v330, %v334
      %v339 = vand.u32 2147483647, %v329
      %vm340 = vcmp.eq.f32.partialorder %v339, 8.507059e+37
      %v341 = vand.u32 %v329, 2147483648
      %v342 = vor.u32 1.1754944e-38, %v341
      %v343 = vsel %vm340, %v342, %v338
      %v344 = vmul.f32 %v279, %v343
      %s345 = scalar_lea.vmem [#allocation2], %s269
      %346 = vst [vmem:[%s345] sm:$0x1] %v312
      %s347 = scalar_lea.vmem [#allocation3], %s269
      %348 = vst [vmem:[%s347] sm:$0x1] %v344
      %s349 = scalar_lea.vmem [#allocation26], %s274
      %v350 = vld [vmem:[%s349] sm:$0x1]
      %s351 = scalar_lea.vmem [#allocation6], %s269
      %vm352 = vcmask 57344
      %353 = vst.msk [vmem:[%s351] sm:$0x1] %vm352, %v350
      %s354 = scalar_lea.vmem [#allocation26], %s275
      %v355 = vld [vmem:[%s354] sm:$0x1]
      %s356 = scalar_lea.vmem [#allocation7], %s269
      %357 = vst.msk [vmem:[%s356] sm:$0x1] %vm352, %v355
    $region53: #{tpu_custom_call.1} parent=1 // loop_footer
      %s273 = sadd.s32 1, %s269
    $region54: #{tpu_custom_call.1} parent=1 // loop_footer_branch
      %268 = sbr.rel target = $region50
    $region55: #{tpu_custom_call.1} parent=1 // loop_exit
      _
    %v358 = vld [vmem:[#allocation2] sm:$0xf]
    %359 = vmatpush.xpose.msra.mxu0 0.0
    %360 = vmatpush.xpose.msra.mxu0 0.0
    %361 = vmatpush.xpose.msra.mxu0 0.0
    %362 = vmatpush.xpose.msra.mxu0 0.0
    %363 = vmatpush.xpose.msra.mxu0 0.0
    %364 = vmatpush.xpose.msra.mxu0 0.0
    %365 = vmatpush.xpose.msra.mxu0 0.0
    %366 = vmatpush.xpose.msra.mxu0 0.0
    %367 = vmatpush.xpose.msra.mxu0 0.0
    %368 = vmatpush.xpose.msra.mxu0 0.0
    %369 = vmatpush.xpose.msra.mxu0 0.0
    %370 = vmatpush.xpose.msra.mxu0 0.0
    %371 = vmatpush.xpose.msra.mxu0 0.0
    %372 = vmatpush.xpose.msra.mxu0 0.0
    %373 = vmatpush.xpose.msra.mxu0 0.0
    %374 = vmatpush.xpose.msra.mxu0 %v220
    %375 = vmatmul.f32.gmra.mxu0 %v358
    %v376 = vpop.f32.mrf.mxu0
    %v377 = vadd.f32 0.0, %v376
    %378 = vdwg.mxu0
    %vm379 = vcmask 60416
    %380 = vst.msk [vmem:[#allocation4] sm:$0xf] %vm379, %v377
    %v381 = vld [vmem:[#allocation3] sm:$0xf]
    %382 = vmatpush.xpose.msra.mxu0 0.0
    %383 = vmatpush.xpose.msra.mxu0 0.0
    %384 = vmatpush.xpose.msra.mxu0 0.0
    %385 = vmatpush.xpose.msra.mxu0 0.0
    %386 = vmatpush.xpose.msra.mxu0 0.0
    %387 = vmatpush.xpose.msra.mxu0 0.0
    %388 = vmatpush.xpose.msra.mxu0 0.0
    %389 = vmatpush.xpose.msra.mxu0 0.0
    %390 = vmatpush.xpose.msra.mxu0 0.0
    %391 = vmatpush.xpose.msra.mxu0 0.0
    %392 = vmatpush.xpose.msra.mxu0 0.0
    %393 = vmatpush.xpose.msra.mxu0 0.0
    %394 = vmatpush.xpose.msra.mxu0 0.0
    %395 = vmatpush.xpose.msra.mxu0 0.0
    %396 = vmatpush.xpose.msra.mxu0 0.0
    %397 = vmatpush.xpose.msra.mxu0 %v220
    %398 = vmatmul.f32.gmra.mxu0 %v381
    %v399 = vpop.f32.mrf.mxu0
    %v400 = vadd.f32 0.0, %v399
    %401 = vdwg.mxu0
    %402 = vst.msk [vmem:[#allocation5] sm:$0xf] %vm379, %v400
    loop: start=0, step=1, limit=4
    $region56: #{tpu_custom_call.1} parent=1 // loop_pre_header
      _
    $region57: #{tpu_custom_call.1} parent=1 // loop_header
      %s404 = sphi 0, %s408
      %p405 = scmp.ge.s32.totalorder %s404, 4
    $region58: #{tpu_custom_call.1} parent=1 // loop_header_branch
      %407 = sbr.rel (%p405) target = $region62
    $region59: #{tpu_custom_call.1} parent=1 // loop_body
      %s409 = sld [smem:[#allocation13 + %s404]]
      %s410 = sld [smem:[#allocation14 + %s404]]
      %s411 = scalar_lea.vmem [#allocation26], %s409
      %v412 = vld [vmem:[%s411] sm:$0x1]
      %s413 = scalar_lea.vmem [#allocation26], %s410
      %v414 = vld [vmem:[%s413] sm:$0x1]
      %s415 = scalar_lea.vmem %s7, %s404
      %v416 = vld [vmem:[%s415] sm:$0x1]
      %vm417 = vcmp.gt.f32.partialorder %v416, 0.0
      %s418 = scalar_lea.vmem [#allocation4], %s404
      %v419 = vld [vmem:[%s418] sm:$0x1]
      %v420 = vsel %vm417, %v419, %v412
      %s421 = scalar_lea.vmem [#allocation18], %s404
      %v422 = vld [vmem:[%s421] sm:$0x1]
      %vm423 = vcmp.gt.f32.partialorder %v422, 0.0
      %s424 = scalar_lea.vmem [#allocation5], %s404
      %v425 = vld [vmem:[%s424] sm:$0x1]
      %v426 = vsel %vm423, %v425, %v414
      %vm427 = vcmask 57344
      %428 = vst.msk [vmem:[%s411] sm:$0x1] %vm427, %v420
      %429 = vst.msk [vmem:[%s413] sm:$0x1] %vm427, %v426
    $region60: #{tpu_custom_call.1} parent=1 // loop_footer
      %s408 = sadd.s32 1, %s404
    $region61: #{tpu_custom_call.1} parent=1 // loop_footer_branch
      %403 = sbr.rel target = $region57
    $region62: #{tpu_custom_call.1} parent=1 // loop_exit
      _
    %v430 = vld [vmem:[#allocation6] sm:$0xf]
    %v431 = vld [vmem:[#allocation7] sm:$0xf]
    %v432 = vld [vmem:[%s9] sm:$0xf]
    %v433 = vld [vmem:[#allocation20] sm:$0xf]
    %v434 = vld [vmem:[#allocation21] sm:$0xf]
    %v435 = vld [vmem:[%s7] sm:$0xf]
    %v436 = vld [vmem:[#allocation2] sm:$0xf]
    %v437 = vld [vmem:[#allocation3] sm:$0xf]
    %v438 = vmul.f32 %v436, %v437
    %vm439 = vcmask 1043456
    %v440 = vsel %vm439, %v438, 0.0
    %441 = vadd.xlane.f32.xlu0 %v440
    %v442 = vpop.xlane.xlu0 %441
    %v443 = vmul.f32 %v430, %v434
    %v444 = vsel %vm379, %v443, 0.0
    %445 = vadd.xlane.f32.xlu0 %v444
    %v446 = vpop.xlane.xlu0 %445
    %v447 = vmul.f32 %v435, %v434
    %v448 = vsel %vm379, %v447, 0.0
    %449 = vadd.xlane.f32.xlu0 %v448
    %v450 = vpop.xlane.xlu0 %449
    %vm451 = vcmp.gt.f32.partialorder %v450, 0.0
    %v452 = vsel %vm451, %v442, %v446
    %v453 = vrcp.pop 0.2
    %v454 = vmul.f32 0.2, %v453
    %v455 = vsub.f32 1.0, %v454
    %v456 = vmul.f32 %v453, %v455
    %v457 = vadd.f32 %v453, %v456
    %vm458 = vweird.f32 %v453
    %v459 = vsel %vm458, %v453, %v457
    %v460 = vmul.f32 %v452, %v459
    %v461 = vmul.f32 %v460, 1.442695
    %v462 = vpow.pop %v461
    %vm463 = vcmp.gt.f32.partialorder %v432, 0.0
    %v464 = vmul.f32 %v430, %v459
    %v465 = vmul.f32 %v464, 1.442695
    %v466 = vpow.pop %v465
    %v467 = vsel %vm463, 0.0, %v466
    %vm468 = vcmp.gt.f32.partialorder %v433, 0.0
    %v469 = vmul.f32 %v431, %v459
    %v470 = vmul.f32 %v469, 1.442695
    %v471 = vpow.pop %v470
    %v472 = vsel %vm468, 0.0, %v471
    %vm473 = vcmp.eq.s32.totalorder %v263, 0
    %v474 = vsel %vm473, 1, 0
    %v475 = vcvt.s32.f32 %v474
    %v476 = vmul.f32 %v467, %v475
    %v477 = vsel %vm379, %v476, 0.0
    %478 = vadd.xlane.f32.xlu0 %v477
    %v479 = vpop.xlane.xlu0 %478
    %vm480 = vcmp.lt.f32.partialorder %v479, %v467
    %v481 = vsel %vm480, 1, 0
    %v482 = vcvt.s32.f32 %v481
    %v483 = vadd.f32 %v482, 0.0
    %vm484 = vcmp.eq.s32.totalorder %v263, 1
    %v485 = vsel %vm484, 1, 0
    %v486 = vcvt.s32.f32 %v485
    %v487 = vmul.f32 %v467, %v486
    %v488 = vsel %vm379, %v487, 0.0
    %489 = vadd.xlane.f32.xlu0 %v488
    %v490 = vpop.xlane.xlu0 %489
    %vm491 = vcmp.lt.f32.partialorder %v490, %v467
    %v492 = vsel %vm491, 1, 0
    %v493 = vcvt.s32.f32 %v492
    %v494 = vadd.f32 %v483, %v493
    %vm495 = vcmp.eq.s32.totalorder %v263, 2
    %v496 = vsel %vm495, 1, 0
    %v497 = vcvt.s32.f32 %v496
    %v498 = vmul.f32 %v467, %v497
    %v499 = vsel %vm379, %v498, 0.0
    %500 = vadd.xlane.f32.xlu0 %v499
    %v501 = vpop.xlane.xlu0 %500
    %vm502 = vcmp.lt.f32.partialorder %v501, %v467
    %v503 = vsel %vm502, 1, 0
    %v504 = vcvt.s32.f32 %v503
    %v505 = vadd.f32 %v494, %v504
    %vm506 = vcmp.eq.s32.totalorder %v263, 3
    %v507 = vsel %vm506, 1, 0
    %v508 = vcvt.s32.f32 %v507
    %v509 = vmul.f32 %v467, %v508
    %v510 = vsel %vm379, %v509, 0.0
    %511 = vadd.xlane.f32.xlu0 %v510
    %v512 = vpop.xlane.xlu0 %511
    %vm513 = vcmp.lt.f32.partialorder %v512, %v467
    %v514 = vsel %vm513, 1, 0
    %v515 = vcvt.s32.f32 %v514
    %v516 = vadd.f32 %v505, %v515
    %vm517 = vcmp.eq.s32.totalorder %v263, 4
    %v518 = vsel %vm517, 1, 0
    %v519 = vcvt.s32.f32 %v518
    %v520 = vmul.f32 %v467, %v519
    %v521 = vsel %vm379, %v520, 0.0
    %522 = vadd.xlane.f32.xlu0 %v521
    %v523 = vpop.xlane.xlu0 %522
    %vm524 = vcmp.lt.f32.partialorder %v523, %v467
    %v525 = vsel %vm524, 1, 0
    %v526 = vcvt.s32.f32 %v525
    %v527 = vadd.f32 %v516, %v526
    %vm528 = vcmp.eq.s32.totalorder %v263, 5
    %v529 = vsel %vm528, 1, 0
    %v530 = vcvt.s32.f32 %v529
    %v531 = vmul.f32 %v467, %v530
    %v532 = vsel %vm379, %v531, 0.0
    %533 = vadd.xlane.f32.xlu0 %v532
    %v534 = vpop.xlane.xlu0 %533
    %vm535 = vcmp.lt.f32.partialorder %v534, %v467
    %v536 = vsel %vm535, 1, 0
    %v537 = vcvt.s32.f32 %v536
    %v538 = vadd.f32 %v527, %v537
    %vm539 = vcmp.eq.s32.totalorder %v263, 6
    %v540 = vsel %vm539, 1, 0
    %v541 = vcvt.s32.f32 %v540
    %v542 = vmul.f32 %v467, %v541
    %v543 = vsel %vm379, %v542, 0.0
    %544 = vadd.xlane.f32.xlu0 %v543
    %v545 = vpop.xlane.xlu0 %544
    %vm546 = vcmp.lt.f32.partialorder %v545, %v467
    %v547 = vsel %vm546, 1, 0
    %v548 = vcvt.s32.f32 %v547
    %v549 = vadd.f32 %v538, %v548
    %vm550 = vcmp.eq.s32.totalorder %v263, 7
    %v551 = vsel %vm550, 1, 0
    %v552 = vcvt.s32.f32 %v551
    %v553 = vmul.f32 %v467, %v552
    %v554 = vsel %vm379, %v553, 0.0
    %555 = vadd.xlane.f32.xlu0 %v554
    %v556 = vpop.xlane.xlu0 %555
    %vm557 = vcmp.lt.f32.partialorder %v556, %v467
    %v558 = vsel %vm557, 1, 0
    %v559 = vcvt.s32.f32 %v558
    %v560 = vadd.f32 %v549, %v559
    %vm561 = vcmp.le.f32.partialorder %v560, 5.5
    %v562 = vsel %vm561, %v467, -1.0
    %v563 = vsel %vm379, %v562, -inf
    %564 = vmax.xlane.f32.xlu0 %v563
    %v565 = vpop.xlane.xlu0 %564
    %vm566 = vcmp.le.f32.partialorder %v560, 6.5
    %v567 = vsel %vm566, %v467, -1.0
    %v568 = vsel %vm379, %v567, -inf
    %569 = vmax.xlane.f32.xlu0 %v568
    %v570 = vpop.xlane.xlu0 %569
    %v571 = vsub.f32 %v570, %v565
    %v572 = vmul.f32 %v571, 0.6
    %v573 = vadd.f32 %v565, %v572
    %v574 = vmul.f32 %v472, %v475
    %v575 = vsel %vm379, %v574, 0.0
    %576 = vadd.xlane.f32.xlu0 %v575
    %v577 = vpop.xlane.xlu0 %576
    %vm578 = vcmp.lt.f32.partialorder %v577, %v472
    %v579 = vsel %vm578, 1, 0
    %v580 = vcvt.s32.f32 %v579
    %v581 = vadd.f32 %v580, 0.0
    %v582 = vmul.f32 %v472, %v486
    %v583 = vsel %vm379, %v582, 0.0
    %584 = vadd.xlane.f32.xlu0 %v583
    %v585 = vpop.xlane.xlu0 %584
    %vm586 = vcmp.lt.f32.partialorder %v585, %v472
    %v587 = vsel %vm586, 1, 0
    %v588 = vcvt.s32.f32 %v587
    %v589 = vadd.f32 %v581, %v588
    %v590 = vmul.f32 %v472, %v497
    %v591 = vsel %vm379, %v590, 0.0
    %592 = vadd.xlane.f32.xlu0 %v591
    %v593 = vpop.xlane.xlu0 %592
    %vm594 = vcmp.lt.f32.partialorder %v593, %v472
    %v595 = vsel %vm594, 1, 0
    %v596 = vcvt.s32.f32 %v595
    %v597 = vadd.f32 %v589, %v596
    %v598 = vmul.f32 %v472, %v508
    %v599 = vsel %vm379, %v598, 0.0
    %600 = vadd.xlane.f32.xlu0 %v599
    %v601 = vpop.xlane.xlu0 %600
    %vm602 = vcmp.lt.f32.partialorder %v601, %v472
    %v603 = vsel %vm602, 1, 0
    %v604 = vcvt.s32.f32 %v603
    %v605 = vadd.f32 %v597, %v604
    %v606 = vmul.f32 %v472, %v519
    %v607 = vsel %vm379, %v606, 0.0
    %608 = vadd.xlane.f32.xlu0 %v607
    %v609 = vpop.xlane.xlu0 %608
    %vm610 = vcmp.lt.f32.partialorder %v609, %v472
    %v611 = vsel %vm610, 1, 0
    %v612 = vcvt.s32.f32 %v611
    %v613 = vadd.f32 %v605, %v612
    %v614 = vmul.f32 %v472, %v530
    %v615 = vsel %vm379, %v614, 0.0
    %616 = vadd.xlane.f32.xlu0 %v615
    %v617 = vpop.xlane.xlu0 %616
    %vm618 = vcmp.lt.f32.partialorder %v617, %v472
    %v619 = vsel %vm618, 1, 0
    %v620 = vcvt.s32.f32 %v619
    %v621 = vadd.f32 %v613, %v620
    %v622 = vmul.f32 %v472, %v541
    %v623 = vsel %vm379, %v622, 0.0
    %624 = vadd.xlane.f32.xlu0 %v623
    %v625 = vpop.xlane.xlu0 %624
    %vm626 = vcmp.lt.f32.partialorder %v625, %v472
    %v627 = vsel %vm626, 1, 0
    %v628 = vcvt.s32.f32 %v627
    %v629 = vadd.f32 %v621, %v628
    %v630 = vmul.f32 %v472, %v552
    %v631 = vsel %vm379, %v630, 0.0
    %632 = vadd.xlane.f32.xlu0 %v631
    %v633 = vpop.xlane.xlu0 %632
    %vm634 = vcmp.lt.f32.partialorder %v633, %v472
    %v635 = vsel %vm634, 1, 0
    %v636 = vcvt.s32.f32 %v635
    %v637 = vadd.f32 %v629, %v636
    %vm638 = vcmp.le.f32.partialorder %v637, 5.5
    %v639 = vsel %vm638, %v472, -1.0
    %v640 = vsel %vm379, %v639, -inf
    %641 = vmax.xlane.f32.xlu0 %v640
    %v642 = vpop.xlane.xlu0 %641
    %vm643 = vcmp.le.f32.partialorder %v637, 6.5
    %v644 = vsel %vm643, %v472, -1.0
    %v645 = vsel %vm379, %v644, -inf
    %646 = vmax.xlane.f32.xlu0 %v645
    %v647 = vpop.xlane.xlu0 %646
    %v648 = vsub.f32 %v647, %v642
    %v649 = vmul.f32 %v648, 0.6
    %v650 = vadd.f32 %v642, %v649
    %vm651 = vcmp.ge.f32.partialorder %v467, %v573
    %v652 = vsel %vm651, %v467, 0.0
    %v653 = vsel %vm379, %v652, 0.0
    %654 = vadd.xlane.f32.xlu0 %v653
    %v655 = vpop.xlane.xlu0 %654
    %vm656 = vcmp.ge.f32.partialorder %v472, %v650
    %v657 = vsel %vm656, %v472, 0.0
    %v658 = vsel %vm379, %v657, 0.0
    %659 = vadd.xlane.f32.xlu0 %v658
    %v660 = vpop.xlane.xlu0 %659
    %v661 = vrcp.pop %v462
    %v662 = vmul.f32 %v462, %v661
    %v663 = vsub.f32 1.0, %v662
    %v664 = vmul.f32 %v661, %v663
    %v665 = vadd.f32 %v661, %v664
    %vm666 = vweird.f32 %v462
    %vm667 = vweird.f32 %v661
    %vm668 = vmor %vm666, %vm667
    %v669 = vsel %vm668, %v661, %v665
    %v670 = vand.u32 2147483647, %v462
    %vm671 = vcmp.eq.f32.partialorder %v670, 8.507059e+37
    %v672 = vand.u32 %v462, 2147483648
    %v673 = vor.u32 1.1754944e-38, %v672
    %v674 = vsel %vm671, %v673, %v669
    %v675 = vmul.f32 %v655, %v674
    %v676 = vadd.f32 %v675, 1.0
    %v677 = vlog2.pop %v676
    %v678 = vmul.f32 %v677, 0.6931472
    %v679 = vmul.f32 %v660, %v674
    %v680 = vadd.f32 %v679, 1.0
    %v681 = vlog2.pop %v680
    %v682 = vmul.f32 %v681, 0.6931472
    %v683 = vadd.f32 %v678, %v682
    %vm684 = vcmask 3072
    %v685 = vsel %vm684, %v683, 0.0
    %686 = vadd.xlane.f32.xlu0 %v685
    %v687 = vpop.xlane.xlu0 %686
    %v688 = vrot.slane %v687, 4
    %v689 = vadd.f32 %v687, %v688
    %v690 = vrot.slane %v689, 2
    %v691 = vadd.f32 %v689, %v690
    %v692 = vrot.slane %v691, 1
    %v693 = vadd.f32 %v691, %v692
    %s694 = vtos %v693
    %v695 = vstv %s694
    %v696 = vrcp.pop 8.0
    %v697 = vmul.f32 8.0, %v696
    %v698 = vsub.f32 1.0, %v697
    %v699 = vmul.f32 %v696, %v698
    %v700 = vadd.f32 %v696, %v699
    %vm701 = vweird.f32 %v696
    %v702 = vsel %vm701, %v696, %v700
    %v703 = vmul.f32 %v695, %v702
    %vm704 = vcmask 0
    %705 = vst.msk [vmem:[#allocation27] sm:$0x1] %vm704, %v703
    // Predicated region
    $region63: #{tpu_custom_call.1} parent=1 // pred_check
      _
    $region64: #{tpu_custom_call.1} parent=1 // pred_check_branch
      %707 = sbr.rel (0) target = $region66
    $region65: #{tpu_custom_call.1} parent=1 // pred_region
      %709 = vsyncadd [#allocation17], 0
      %s711 = sshll.u32 [#allocation23], 4
      %s712 = int_to_ptr.vmem [resolvable:$true] %s711
      %s713 = sshll.u32 %s12, 4
      %s714 = int_to_ptr.hbm [resolvable:$true] %s713
      %716 = dma.vmem_to_hbm [thread:$0]  %s712, 128, %s714, [#allocation17]
    $region66: #{tpu_custom_call.1} parent=1 // pred_fallthru
      _
    // Predicated region
    $region67: #{tpu_custom_call.1} parent=1 // pred_check
      _
    $region68: #{tpu_custom_call.1} parent=1 // pred_check_branch
      %718 = sbr.rel (0) target = $region70
    $region69: #{tpu_custom_call.1} parent=1 // pred_region
      %720 = vsyncadd [#allocation25], 0
      %s722 = sshll.u32 [#allocation24], 4
      %s723 = int_to_ptr.vmem [resolvable:$true] %s722
      %s724 = sshll.u32 %s13, 4
      %s725 = int_to_ptr.hbm [resolvable:$true] %s724
      %727 = dma.vmem_to_hbm [thread:$0]  %s723, 128, %s725, [#allocation25]
    $region70: #{tpu_custom_call.1} parent=1 // pred_fallthru
      _
    // Predicated region
    $region71: #{tpu_custom_call.1} parent=1 // pred_check
      _
    $region72: #{tpu_custom_call.1} parent=1 // pred_check_branch
      %729 = sbr.rel (0) target = $region74
    $region73: #{tpu_custom_call.1} parent=1 // pred_region
      %731 = vsyncadd [#allocation25], 0
      %s733 = sshll.u32 [#allocation26], 4
      %s734 = int_to_ptr.vmem [resolvable:$true] %s733
      %s735 = sshll.u32 %s14, 4
      %s736 = int_to_ptr.hbm [resolvable:$true] %s735
      %738 = dma.vmem_to_hbm [thread:$0]  %s734, 128, %s736, [#allocation25]
    $region74: #{tpu_custom_call.1} parent=1 // pred_fallthru
      _
    // Predicated region
    $region75: #{tpu_custom_call.1} parent=1 // pred_check
      _
    $region76: #{tpu_custom_call.1} parent=1 // pred_check_branch
      %740 = sbr.rel (0) target = $region78
    $region77: #{tpu_custom_call.1} parent=1 // pred_region
      %742 = vsyncadd [#allocation28], 0
      %s744 = sshll.u32 [#allocation27], 4
      %s745 = int_to_ptr.vmem [resolvable:$true] %s744
      %s746 = sshll.u32 %s15, 4
      %s747 = int_to_ptr.hbm [resolvable:$true] %s746
      %749 = dma.vmem_to_hbm [thread:$0]  %s745, 16, %s747, [#allocation28]
    $region78: #{tpu_custom_call.1} parent=1 // pred_fallthru
      _
    // Predicated region
    $region79: #{tpu_custom_call.1} parent=1 // pred_check
      _
    $region80: #{tpu_custom_call.1} parent=1 // pred_check_branch
      %751 = sbr.rel (0) target = $region82
    $region81: #{tpu_custom_call.1} parent=1 // pred_region
      %753 = dma.done [#allocation17], 128
    $region82: #{tpu_custom_call.1} parent=1 // pred_fallthru
      _
    // Predicated region
    $region83: #{tpu_custom_call.1} parent=1 // pred_check
      _
    $region84: #{tpu_custom_call.1} parent=1 // pred_check_branch
      %755 = sbr.rel (0) target = $region86
    $region85: #{tpu_custom_call.1} parent=1 // pred_region
      %757 = dma.done [#allocation25], 128
    $region86: #{tpu_custom_call.1} parent=1 // pred_fallthru
      _
    // Predicated region
    $region87: #{tpu_custom_call.1} parent=1 // pred_check
      _
    $region88: #{tpu_custom_call.1} parent=1 // pred_check_branch
      %759 = sbr.rel (0) target = $region90
    $region89: #{tpu_custom_call.1} parent=1 // pred_region
      %761 = dma.done [#allocation25], 128
    $region90: #{tpu_custom_call.1} parent=1 // pred_fallthru
      _
    // Predicated region
    $region91: #{tpu_custom_call.1} parent=1 // pred_check
      _
    $region92: #{tpu_custom_call.1} parent=1 // pred_check_branch
      %763 = sbr.rel (0) target = $region94
    $region93: #{tpu_custom_call.1} parent=1 // pred_region
      %765 = dma.done [#allocation28], 16
    $region94: #{tpu_custom_call.1} parent=1 // pred_fallthru
      _
    %766 = vsyncpa [#allocation16], 1
    %767 = vsyncpa [#allocation19], 1
    %768 = vsyncpa [#allocation22], 1
    %769 = vsyncpa [#allocation17], 1
    %770 = vsyncpa [#allocation25], 1
    %771 = vsyncpa [#allocation28], 1

</llo_original>
